<compile_context>
chip_gen: v7x
topology: tpu7x:2x2x1
jax: 0.10.0
libtpu: 0.0.40
codegen_flags: <defaults>
</compile_context>

<pallas_src>
import functools

import jax
import jax.numpy as jnp
from jax.experimental import pallas as pl
from jax.experimental.pallas import tpu as pltpu


_ACTS = {
    "Tanh": jnp.tanh,
    "ReLU": lambda v: jnp.maximum(v, 0.0),
    "Sigmoid": jax.nn.sigmoid,
}

# dtype of the HBM carry between the block-level pallas_calls.  float32 keeps
# the closest parity with the PyTorch module; set to jnp.bfloat16 on
# bandwidth-starved parts (v5e) to halve inter-block HBM traffic.  In-kernel
# accumulation is float32 either way.
CARRY_DTYPE = jnp.float32

# dtype fed to the MXU: bf16 weights/operands, float32 accumulation (native
# MXU rate on v5e/v6e/v7x, half the operand VMEM/vld traffic).  Set to
# jnp.float32 for exact numerical parity with the PyTorch module.
MATMUL_DTYPE = jnp.bfloat16


def _itemsize(dt):
    return jax.dtypes.canonicalize_dtype(dt).itemsize


@functools.lru_cache(maxsize=None)
def _vmem_limit_bytes():
    """Generation-dependent scoped-VMEM cap: v5e/v6e have 128 MiB physical
    VMEM, v7x only 64 MiB.  Leave headroom for Mosaic internal scratch."""
    try:
        cap = int(pltpu.get_tpu_info().vmem_capacity_bytes)
    except Exception:  # no TPU / interpret mode / API drift -> conservative
        cap = 64 * 1024 * 1024
    return int(min(max(cap - 16 * 1024 * 1024, 32 * 1024 * 1024),
                   112 * 1024 * 1024))


def _resident_spec(arr):
    """Whole-array BlockSpec with a constant index map: fetched once and kept
    VMEM-resident across the grid (used for the small weight tensors)."""
    ndim = arr.ndim
    return pl.BlockSpec(arr.shape, lambda *_: (0,) * ndim)


def _round_up(n, m):
    return ((n + m - 1) // m) * m


def _pick_tile_l(n, max_tile):
    """Largest multiple-of-128 divisor of n that is <= max_tile (lane-dense
    tiles).  n is always a multiple of 128 here, so the fallback is unused."""
    best = None
    t = 128
    while t <= min(n, max_tile):
        if n % t == 0:
            best = t
        t += 128
    return best if best is not None else n


def _shift_right(v, s):
    """Right-shift columns by s inside the fixed-length frame:
    result[:, t] == v[:, t - s] for every t >= s.  The first s columns are
    don't-care (they lie in the invalid left region of the frame); they are
    filled with v's left edge so both concat operands start lane-aligned."""
    if s == 0:
        return v
    return jnp.concatenate([v[:, :s], v[:, :-s]], axis=1)


# ----------------------------------------------------------------------------
# Kernel 1: one whole _Layers block, fused, on the fixed right-aligned frame.
#   x = rechannel(y)
#   for each dilation d:
#     z   = fused_w @ [shift(x,(K-1)d); ...; shift(x,0); cond]  + conv_bias
#     za  = act(z[:C]) * sigmoid(z[C:])        (or act(z) if not gated)
#     x   = x + 1x1(za)                        (residual, full frame)
#     acc = acc + za                           (head accumulation, full frame)
#   outputs: (x, head_rechannel(acc))          (valid columns are rightmost)
# ----------------------------------------------------------------------------
def _wavenet_block_kernel(*refs, has_head_in, kernel_size, dilations, gated,
                          activation, channels):
    if has_head_in:
        (y_ref, c_ref, hi_ref, wr_ref, wf_ref, cb_ref, w1_ref, b1_ref,
         whr_ref, bhr_ref, y_out_ref, h_out_ref) = refs
    else:
        (y_ref, c_ref, wr_ref, wf_ref, cb_ref, w1_ref, b1_ref,
         whr_ref, bhr_ref, y_out_ref, h_out_ref) = refs
        hi_ref = None

    act = _ACTS[activation]
    K, C = kernel_size, channels
    Lw = y_ref.shape[-1]

    # _rechannel (1x1, no bias): bf16 MXU matmul, f32 accumulation.
    x = jnp.dot(wr_ref[...], y_ref[...].astype(MATMUL_DTYPE),
                preferred_element_type=jnp.float32)              # (C, Lw) f32

    # Condition cast once per block; every layer reuses the same slab.
    c_mm = c_ref[...].astype(MATMUL_DTYPE)                       # (Dc, Lw)

    # Running head accumulator stays in VMEM/vregs for the whole block.
    if has_head_in:
        head_acc = hi_ref[...].astype(jnp.float32)               # (C, Lw)
    else:
        head_acc = jnp.zeros((C, Lw), jnp.float32)

    for i, d in enumerate(dilations):
        x_mm = x.astype(MATMUL_DTYPE)
        # Fused dilated-conv taps + condition mixer: ONE (mid, K*C+Dc) x
        # (K*C+Dc, Lw) MXU matmul.  Tap j pairs with a right-shift of
        # (K-1-j)*d; the frame stays full length and right-aligned, so the
        # mixer term and the residual need no per-layer slicing.
        stacked = jnp.concatenate(
            [_shift_right(x_mm, (K - 1 - j) * d) for j in range(K)] + [c_mm],
            axis=0)                                              # (K*C+Dc, Lw)
        z = jnp.dot(wf_ref[i], stacked,
                    preferred_element_type=jnp.float32) + cb_ref[i]
        if gated:
            za = act(z[:C]) * jax.nn.sigmoid(z[C:])
        else:
            za = act(z)
        # Residual (f32) via bf16 1x1 matmul; head accumulation in f32.
        x = (x + jnp.dot(w1_ref[i], za.astype(MATMUL_DTYPE),
                         preferred_element_type=jnp.float32) + b1_ref[i])
        head_acc = head_acc + za

    y_out_ref[...] = x.astype(y_out_ref.dtype)
    h_out_ref[...] = (jnp.dot(whr_ref[...], head_acc.astype(MATMUL_DTYPE),
                              preferred_element_type=jnp.float32)
                      + bhr_ref[...]).astype(h_out_ref.dtype)


def wavenet_block(y, cond, head_in, lp):
    """One _Layers block as a single pallas_call on the fixed frame Lw.

    y:       (B, Cin, Lw)  block input (valid columns = rightmost v_in)
    cond:    (B, Dc,  Lw)  padded network condition (fully valid)
    head_in: (B, C,   Lw)  running head accumulator, or None
    returns (head_out (B, head_size, Lw), y_out (B, C, Lw)); the rightmost
    v_in - (receptive_field - 1) columns of each output are valid.
    """
    assert "packed" in lp, "call pack_params(params) before wavenet_forward"
    cfg = lp["config"]
    K, dils = cfg["kernel_size"], tuple(cfg["dilations"])
    C, gated = cfg["channels"], cfg["gated"]
    B, Cin, Lw = y.shape
    _, Dc, Lc = cond.shape
    assert Lc == Lw and Lw % 128 == 0, (Lc, Lw)

    pk = lp["packed"]
    mid = pk["fused_w"].shape[1]
    # Gated split z[:C]/z[C:] requires mid == 2*C exactly.
    assert mid == (2 * C if gated else C), (mid, C, gated)
    head_size = pk["head_rechannel_w"].shape[0]

    inputs = [y, cond]
    act_specs = [
        pl.BlockSpec((None, Cin, Lw), lambda b: (b, 0, 0)),
        pl.BlockSpec((None, Dc, Lw), lambda b: (b, 0, 0)),
    ]
    if head_in is not None:
        inputs.append(head_in)
        act_specs.append(pl.BlockSpec((None, C, Lw), lambda b: (b, 0, 0)))
    weights = [pk["rechannel_w"], pk["fused_w"], pk["conv_b"],
               pk["mix1x1_w"], pk["mix1x1_b"],
               pk["head_rechannel_w"], pk["head_rechannel_b"]]

    kern = functools.partial(
        _wavenet_block_kernel,
        has_head_in=head_in is not None, kernel_size=K, dilations=dils,
        gated=gated, activation=cfg["activation"], channels=C)

    n_dil = len(dils)
    flops = 2 * B * Lw * (C * Cin + head_size * C
                          + n_dil * (mid * (K * C + Dc) + C * C))
    trans = 2 * B * Lw * n_dil * mid
    bytes_acc = int(
        sum(int(a.size) * a.dtype.itemsize for a in inputs)
        + sum(int(w.size) * w.dtype.itemsize for w in weights)
        + B * (C + head_size) * Lw * _itemsize(CARRY_DTYPE))

    y_out, h_out = pl.pallas_call(
        kern,
        grid=(B,),
        in_specs=act_specs + [_resident_spec(w) for w in weights],
        out_specs=(pl.BlockSpec((None, C, Lw), lambda b: (b, 0, 0)),
                   pl.BlockSpec((None, head_size, Lw), lambda b: (b, 0, 0))),
        out_shape=(jax.ShapeDtypeStruct((B, C, Lw), CARRY_DTYPE),
                   jax.ShapeDtypeStruct((B, head_size, Lw), CARRY_DTYPE)),
        compiler_params=pltpu.CompilerParams(
            dimension_semantics=("parallel",),
            vmem_limit_bytes=_vmem_limit_bytes()),
        cost_estimate=pl.CostEstimate(flops=flops, transcendentals=trans,
                                      bytes_accessed=bytes_acc),
    )(*inputs, *weights)
    return h_out, y_out


# ----------------------------------------------------------------------------
# Kernel 2: the whole _Head MLP, fused.  Grid over (batch, lane-dense tiles).
# ----------------------------------------------------------------------------
def _head_kernel(*refs, n_layers, activation, scale):
    x_ref = refs[0]
    w_refs = refs[1:1 + n_layers]
    b_refs = refs[1 + n_layers:1 + 2 * n_layers]
    o_ref = refs[-1]
    act = _ACTS[activation]
    v = x_ref[...].astype(jnp.float32) * scale            # head_scale folded in
    for i in range(n_layers):
        v = act(v)
        v = (jnp.dot(w_refs[i][...], v.astype(MATMUL_DTYPE),
                     preferred_element_type=jnp.float32) + b_refs[i][...])
    o_ref[...] = v.astype(o_ref.dtype)


def wavenet_head(head_input, head_params, head_scale, *, max_tile_l=4096):
    B, Cin, Lw = head_input.shape
    ws = head_params["packed_w"]
    bs = head_params["packed_b"]
    n_layers = len(ws)
    out_ch = ws[-1].shape[0]
    tile_l = _pick_tile_l(Lw, max_tile_l)
    n_t = Lw // tile_l
    weights = list(ws) + list(bs)

    chans = [w.shape[0] for w in ws]
    cins = [Cin] + chans[:-1]
    flops = 2 * B * Lw * sum(co * ci for co, ci in zip(chans, cins))
    trans = B * Lw * sum(cins)
    bytes_acc = int(int(head_input.size) * head_input.dtype.itemsize
                    + B * out_ch * Lw * 4
                    + sum(int(w.size) * w.dtype.itemsize for w in weights))

    return pl.pallas_call(
        functools.partial(_head_kernel, n_layers=n_layers,
                          activation=head_params["activation"],
                          scale=float(head_scale)),
        grid=(B, n_t),
        in_specs=([pl.BlockSpec((None, Cin, tile_l), lambda b, t: (b, 0, t))]
                  + [_resident_spec(w) for w in weights]),
        out_specs=pl.BlockSpec((None, out_ch, tile_l), lambda b, t: (b, 0, t)),
        out_shape=jax.ShapeDtypeStruct((B, out_ch, Lw), jnp.float32),
        compiler_params=pltpu.CompilerParams(
            dimension_semantics=("parallel", "parallel"),
            vmem_limit_bytes=_vmem_limit_bytes()),
        cost_estimate=pl.CostEstimate(flops=flops, transcendentals=trans,
                                      bytes_accessed=bytes_acc),
    )(head_input, *weights)


# ----------------------------------------------------------------------------
# Full _WaveNet forward (one fused kernel per block + one fused head kernel)
# ----------------------------------------------------------------------------
def wavenet_forward(x, params, *, max_tile_l=4096):
    """x: (B, Cx, L) -> (B, Cy, L - R + 1) with R = total receptive field."""
    B, Cx, L = x.shape
    rf_total = 1 + sum(
        (lp["config"]["kernel_size"] - 1) * sum(lp["config"]["dilations"])
        for lp in params["layers"])
    out_len = L - (rf_total - 1)
    assert out_len > 0, "input shorter than the receptive field"

    # Fixed lane-dense frame: left-pad to a multiple of 128.  Everything stays
    # right-aligned at this length; the padded (invalid) left columns never
    # influence the valid output, which is sliced out once at the very end.
    Lw = _round_up(L, 128)
    xp = jnp.pad(x.astype(jnp.float32), ((0, 0), (0, 0), (Lw - L, 0)))
    cond = xp.astype(CARRY_DTYPE)

    y, head_input = cond, None
    for lp in params["layers"]:
        head_input, y = wavenet_block(y, cond, head_input, lp)

    if params["head"] is None:
        out = params["head_scale"] * head_input.astype(jnp.float32)
    else:
        out = wavenet_head(head_input, params["head"], params["head_scale"],
                           max_tile_l=max_tile_l)
    return out[:, :, Lw - out_len:]


# ----------------------------------------------------------------------------
# Pure-JAX reference (same math, full f32, no Pallas) for correctness checks.
# ----------------------------------------------------------------------------
_HI = jax.lax.Precision.HIGHEST


def _ref_pointwise(x, w, b=None, activation=None, scale=1.0):
    xb = x * scale
    if activation is not None:
        xb = _ACTS[activation](xb)
    out = jnp.einsum("oi,bil->bol", w, xb, precision=_HI)
    if b is not None:
        out = out + b[None, :, None]
    return out


def _ref_layer(x, h, p, *, kernel_size, dilation, gated, activation, out_length):
    B, C, Lx = x.shape
    Lz = Lx - (kernel_size - 1) * dilation
    z = jnp.broadcast_to(p["conv_b"][None, :, None], (B, p["conv_b"].shape[0], Lz))
    for j in range(kernel_size):
        z = z + jnp.einsum("oi,bil->bol", p["conv_w"][j],
                           x[:, :, j * dilation:j * dilation + Lz], precision=_HI)
    z = z + jnp.einsum("oi,bil->bol", p["mixer_w"], h, precision=_HI)[:, :, -Lz:]
    act = _ACTS[activation]
    za = act(z[:, :C]) * jax.nn.sigmoid(z[:, C:]) if gated else act(z)
    nxt = x[:, :, -Lz:] + _ref_pointwise(za, p["mix1x1_w"], p["mix1x1_b"])
    return nxt, za[:, :, -out_length:]


def ref_forward(x, params):
    y, head_input = x, None
    for lp in params["layers"]:
        cfg = lp["config"]
        k, dils = cfg["kernel_size"], cfg["dilations"]
        rf = 1 + (k - 1) * sum(dils)
        out_length = y.shape[2] - (rf - 1)
        yc = _ref_pointwise(y, lp["rechannel_w"], None)
        for p, d in zip(lp["dilated"], dils):
            yc, ht = _ref_layer(yc, x, p, kernel_size=k, dilation=d,
                                gated=cfg["gated"], activation=cfg["activation"],
                                out_length=out_length)
            head_input = ht if head_input is None else head_input[:, :, -out_length:] + ht
        head_input = _ref_pointwise(head_input, lp["head_rechannel_w"],
                                    lp["head_rechannel_b"])
        y = yc
    head_input = params["head_scale"] * head_input
    if params["head"] is None:
        return head_input
    out = head_input
    for hl in params["head"]["layers"]:
        out = _ref_pointwise(out, hl["w"], hl["b"],
                             activation=params["head"]["activation"])
    return out


# ----------------------------------------------------------------------------
# Deterministic parameter init (shapes follow the PyTorch __init__) + packing
# ----------------------------------------------------------------------------
def _winit(key, shape, fan_in):
    return jax.random.normal(key, shape, jnp.float32) / jnp.sqrt(float(fan_in))


def init_params(key, layers_configs, head_config, head_scale):
    params = {"layers": [], "head": None, "head_scale": float(head_scale)}
    for lc in layers_configs:
        ch, k = lc["channels"], lc["kernel_size"]
        mid = 2 * ch if lc["gated"] else ch
        key, k_re, k_hr, k_hrb = jax.random.split(key, 4)
        lp = {
            "config": dict(lc),
            "rechannel_w": _winit(k_re, (ch, lc["input_size"]), lc["input_size"]),
            "head_rechannel_w": _winit(k_hr, (lc["head_size"], ch), ch),
            "head_rechannel_b": (0.01 * jax.random.normal(k_hrb, (lc["head_size"],),
                                                          jnp.float32)
                                 if lc["head_bias"] else None),
            "dilated": [],
        }
        for _d in lc["dilations"]:
            key, kc, kcb, km, k1, k1b = jax.random.split(key, 6)
            lp["dilated"].append({
                "conv_w": _winit(kc, (k, mid, ch), ch * k),       # (K, mid, C)
                "conv_b": 0.01 * jax.random.normal(kcb, (mid,), jnp.float32),
                "mixer_w": _winit(km, (mid, lc["condition_size"]),
                                  lc["condition_size"]),
                "mix1x1_w": _winit(k1, (ch, ch), ch),
                "mix1x1_b": 0.01 * jax.random.normal(k1b, (ch,), jnp.float32),
            })
        params["layers"].append(lp)
    if head_config is not None:
        hp = {"activation": head_config["activation"], "layers": []}
        cin = head_config["in_channels"]
        for i in range(head_config["num_layers"]):
            cout = (head_config["channels"] if i != head_config["num_layers"] - 1
                    else head_config["out_channels"])
            key, kw, kb = jax.random.split(key, 3)
            hp["layers"].append({"w": _winit(kw, (cout, cin), cin),
                                 "b": 0.01 * jax.random.normal(kb, (cout,),
                                                               jnp.float32)})
            cin = head_config["channels"]
        params["head"] = hp
    return params


def pack_params(params):
    """Fuse/stack per-layer weights into the per-block arrays the kernels
    consume.  Matmul weights are pre-cast to MATMUL_DTYPE (bf16); biases stay
    float32 (added after the f32 accumulation)."""
    for lp in params["layers"]:
        K = lp["config"]["kernel_size"]
        head_size = lp["head_rechannel_w"].shape[0]
        hrb = lp["head_rechannel_b"]
        if hrb is None:
            hrb = jnp.zeros((head_size,), jnp.float32)
        # Fused (taps + mixer) weight: (n_dil, mid, K*C + Dc).  Tap j pairs
        # with a right-shift of (K-1-j)*dilation inside the kernel.
        fused = jnp.stack([
            jnp.concatenate([d["conv_w"][j] for j in range(K)]
                            + [d["mixer_w"]], axis=1)
            for d in lp["dilated"]])
        lp["packed"] = {
            "rechannel_w": jnp.asarray(lp["rechannel_w"], MATMUL_DTYPE),
            "fused_w": fused.astype(MATMUL_DTYPE),
            "conv_b": jnp.stack([d["conv_b"] for d in lp["dilated"]]
                                ).astype(jnp.float32)[:, :, None],
            "mix1x1_w": jnp.stack([d["mix1x1_w"] for d in lp["dilated"]]
                                  ).astype(MATMUL_DTYPE),
            "mix1x1_b": jnp.stack([d["mix1x1_b"] for d in lp["dilated"]]
                                  ).astype(jnp.float32)[:, :, None],
            "head_rechannel_w": jnp.asarray(lp["head_rechannel_w"], MATMUL_DTYPE),
            "head_rechannel_b": jnp.asarray(hrb, jnp.float32).reshape(-1, 1),
        }
    if params["head"] is not None:
        hp = params["head"]
        hp["packed_w"] = [jnp.asarray(hl["w"], MATMUL_DTYPE) for hl in hp["layers"]]
        hp["packed_b"] = [jnp.asarray(hl["b"], jnp.float32).reshape(-1, 1)
                          for hl in hp["layers"]]
    return params


if __name__ == "__main__":
    # Small demo shapes.  L = 268 -> padded frame Lw = 384, total receptive
    # field R = 13 -> final valid out_length = 256.
    B, Cx, L = 2, 2, 268
    layers_configs = [
        dict(input_size=Cx, condition_size=Cx, head_size=8, channels=8,
             kernel_size=3, dilations=(1, 2), activation="Tanh", gated=True,
             head_bias=True),
        dict(input_size=8, condition_size=Cx, head_size=8, channels=8,
             kernel_size=3, dilations=(1, 2), activation="Tanh", gated=True,
             head_bias=True),
    ]
    head_config = dict(in_channels=8, channels=8, activation="Tanh",
                       num_layers=2, out_channels=1)
    head_scale = 0.5

    key = jax.random.PRNGKey(0)
    key, kx, kp = jax.random.split(key, 3)
    x = jax.random.normal(kx, (B, Cx, L), jnp.float32)
    params = pack_params(init_params(kp, layers_configs, head_config, head_scale))

    out = jax.block_until_ready(wavenet_forward(x, params))

    R = 1 + sum((lc["kernel_size"] - 1) * sum(lc["dilations"])
                for lc in layers_configs)
    assert out.shape == (B, head_config["out_channels"], L - R + 1), out.shape

    ref = jax.block_until_ready(ref_forward(x, params))
    err = float(jnp.max(jnp.abs(out - ref)))
    # bf16 MXU path: tolerance covers bf16 weight/operand rounding vs the
    # full-f32 reference (set MATMUL_DTYPE=float32 for ~1e-6 parity).
    assert err < 5e-2, f"max abs err {err}"

    print("KERNEL_OK")
</pallas_src>

<mosaic_0001>
module attributes {stable_mosaic.version = 11 : i64} {
  func.func @_wavenet_block_kernel(%arg0: i32, %arg1: memref<1x2x384xf32, #tpu.memory_space<vmem>>, %arg2: memref<1x2x384xf32, #tpu.memory_space<vmem>>, %arg3: memref<8x2xbf16, #tpu.memory_space<vmem>>, %arg4: memref<2x16x26xbf16, #tpu.memory_space<vmem>>, %arg5: memref<2x16x1xf32, #tpu.memory_space<vmem>>, %arg6: memref<2x8x8xbf16, #tpu.memory_space<vmem>>, %arg7: memref<2x8x1xf32, #tpu.memory_space<vmem>>, %arg8: memref<8x8xbf16, #tpu.memory_space<vmem>>, %arg9: memref<8x1xf32, #tpu.memory_space<vmem>>, %arg10: memref<1x8x384xf32, #tpu.memory_space<vmem>>, %arg11: memref<1x8x384xf32, #tpu.memory_space<vmem>>) attributes {dimension_semantics = [#tpu.dimension_semantics<parallel>], iteration_bounds = array<i64: 2>, scalar_prefetch = 0 : i64, scratch_operands = 0 : i64, tpu.core_type = #tpu.core_type<tc>, window_params = [{transform_indices = @transform_0, window_bounds = array<i64: 1, 2, 384>}, {transform_indices = @transform_1, window_bounds = array<i64: 1, 2, 384>}, {pipeline_mode = #tpu.pipeline_mode<synchronous>, transform_indices = @transform_2, window_bounds = array<i64: 8, 2>}, {pipeline_mode = #tpu.pipeline_mode<synchronous>, transform_indices = @transform_3, window_bounds = array<i64: 2, 16, 26>}, {pipeline_mode = #tpu.pipeline_mode<synchronous>, transform_indices = @transform_4, window_bounds = array<i64: 2, 16, 1>}, {pipeline_mode = #tpu.pipeline_mode<synchronous>, transform_indices = @transform_5, window_bounds = array<i64: 2, 8, 8>}, {pipeline_mode = #tpu.pipeline_mode<synchronous>, transform_indices = @transform_6, window_bounds = array<i64: 2, 8, 1>}, {pipeline_mode = #tpu.pipeline_mode<synchronous>, transform_indices = @transform_7, window_bounds = array<i64: 8, 8>}, {pipeline_mode = #tpu.pipeline_mode<synchronous>, transform_indices = @transform_8, window_bounds = array<i64: 8, 1>}, {transform_indices = @transform_9, window_bounds = array<i64: 1, 8, 384>}, {transform_indices = @transform_10, window_bounds = array<i64: 1, 8, 384>}]} {
    %c0 = arith.constant 0 : index
    %c0_0 = arith.constant 0 : index
    %0 = vector.load %arg3[%c0, %c0_0] : memref<8x2xbf16, #tpu.memory_space<vmem>>, vector<8x2xbf16>
    %c0_1 = arith.constant 0 : index
    %c0_2 = arith.constant 0 : index
    %c0_3 = arith.constant 0 : index
    %1 = vector.load %arg1[%c0_1, %c0_2, %c0_3] : memref<1x2x384xf32, #tpu.memory_space<vmem>>, vector<1x2x384xf32>
    %2 = vector.shape_cast %1 : vector<1x2x384xf32> to vector<2x384xf32>
    %3 = arith.truncf %2 : vector<2x384xf32> to vector<2x384xbf16>
    %cst = arith.constant dense<0.000000e+00> : vector<8x384xf32>
    %4 = tpu.matmul %0, %3, %cst {dimension_numbers = #tpu.dot_dimension_numbers<[1], [0], [0], [1], [0, 0, 1, 1], [], []>} : vector<8x2xbf16>, vector<2x384xbf16>, vector<8x384xf32> -> vector<8x384xf32>
    %c0_4 = arith.constant 0 : index
    %c0_5 = arith.constant 0 : index
    %c0_6 = arith.constant 0 : index
    %5 = vector.load %arg2[%c0_4, %c0_5, %c0_6] : memref<1x2x384xf32, #tpu.memory_space<vmem>>, vector<1x2x384xf32>
    %6 = vector.shape_cast %5 : vector<1x2x384xf32> to vector<2x384xf32>
    %7 = arith.truncf %6 : vector<2x384xf32> to vector<2x384xbf16>
    %cst_7 = arith.constant 0.000000e+00 : f32
    %8 = vector.broadcast %cst_7 : f32 to vector<8x384xf32>
    %9 = arith.truncf %4 : vector<8x384xf32> to vector<8x384xbf16>
    %10 = vector.extract_strided_slice %9 {offsets = [0, 0], sizes = [8, 2], strides = [1, 1]} : vector<8x384xbf16> to vector<8x2xbf16>
    %11 = vector.extract_strided_slice %9 {offsets = [0, 0], sizes = [8, 382], strides = [1, 1]} : vector<8x384xbf16> to vector<8x382xbf16>
    %12 = tpu.concatenate %10, %11 in 1 : vector<8x2xbf16>, vector<8x382xbf16> -> vector<8x384xbf16>
    %13 = vector.extract_strided_slice %9 {offsets = [0, 0], sizes = [8, 1], strides = [1, 1]} : vector<8x384xbf16> to vector<8x1xbf16>
    %14 = vector.extract_strided_slice %9 {offsets = [0, 0], sizes = [8, 383], strides = [1, 1]} : vector<8x384xbf16> to vector<8x383xbf16>
    %15 = tpu.concatenate %13, %14 in 1 : vector<8x1xbf16>, vector<8x383xbf16> -> vector<8x384xbf16>
    %16 = tpu.concatenate %12, %15, %9, %7 in 0 : vector<8x384xbf16>, vector<8x384xbf16>, vector<8x384xbf16>, vector<2x384xbf16> -> vector<26x384xbf16>
    %c0_8 = arith.constant 0 : index
    %c0_9 = arith.constant 0 : index
    %c0_10 = arith.constant 0 : index
    %17 = vector.load %arg4[%c0_8, %c0_9, %c0_10] : memref<2x16x26xbf16, #tpu.memory_space<vmem>>, vector<1x16x26xbf16>
    %18 = vector.shape_cast %17 : vector<1x16x26xbf16> to vector<16x26xbf16>
    %cst_11 = arith.constant dense<0.000000e+00> : vector<16x384xf32>
    %19 = tpu.matmul %18, %16, %cst_11 {dimension_numbers = #tpu.dot_dimension_numbers<[1], [0], [0], [1], [0, 0, 1, 1], [], []>} : vector<16x26xbf16>, vector<26x384xbf16>, vector<16x384xf32> -> vector<16x384xf32>
    %c0_12 = arith.constant 0 : index
    %c0_13 = arith.constant 0 : index
    %c0_14 = arith.constant 0 : index
    %20 = vector.load %arg5[%c0_12, %c0_13, %c0_14] : memref<2x16x1xf32, #tpu.memory_space<vmem>>, vector<1x16x1xf32>
    %21 = vector.shape_cast %20 : vector<1x16x1xf32> to vector<16x1xf32>
    %22 = vector.broadcast %21 : vector<16x1xf32> to vector<16x384xf32>
    %23 = arith.addf %19, %22 : vector<16x384xf32>
    %24 = vector.extract_strided_slice %23 {offsets = [0, 0], sizes = [8, 384], strides = [1, 1]} : vector<16x384xf32> to vector<8x384xf32>
    %25 = math.tanh %24 : vector<8x384xf32>
    %26 = vector.extract_strided_slice %23 {offsets = [8, 0], sizes = [8, 384], strides = [1, 1]} : vector<16x384xf32> to vector<8x384xf32>
    %27 = arith.negf %26 : vector<8x384xf32>
    %28 = math.exp %27 : vector<8x384xf32>
    %cst_15 = arith.constant 1.000000e+00 : f32
    %29 = vector.broadcast %cst_15 : f32 to vector<8x384xf32>
    %30 = arith.addf %29, %28 : vector<8x384xf32>
    %31 = arith.divf %29, %30 : vector<8x384xf32>
    %32 = arith.mulf %25, %31 : vector<8x384xf32>
    %c0_16 = arith.constant 0 : index
    %c0_17 = arith.constant 0 : index
    %c0_18 = arith.constant 0 : index
    %33 = vector.load %arg6[%c0_16, %c0_17, %c0_18] : memref<2x8x8xbf16, #tpu.memory_space<vmem>>, vector<1x8x8xbf16>
    %34 = vector.shape_cast %33 : vector<1x8x8xbf16> to vector<8x8xbf16>
    %35 = arith.truncf %32 : vector<8x384xf32> to vector<8x384xbf16>
    %cst_19 = arith.constant dense<0.000000e+00> : vector<8x384xf32>
    %36 = tpu.matmul %34, %35, %cst_19 {dimension_numbers = #tpu.dot_dimension_numbers<[1], [0], [0], [1], [0, 0, 1, 1], [], []>} : vector<8x8xbf16>, vector<8x384xbf16>, vector<8x384xf32> -> vector<8x384xf32>
    %37 = arith.addf %4, %36 : vector<8x384xf32>
    %c0_20 = arith.constant 0 : index
    %c0_21 = arith.constant 0 : index
    %c0_22 = arith.constant 0 : index
    %38 = vector.load %arg7[%c0_20, %c0_21, %c0_22] : memref<2x8x1xf32, #tpu.memory_space<vmem>>, vector<1x8x1xf32>
    %39 = vector.shape_cast %38 : vector<1x8x1xf32> to vector<8x1xf32>
    %40 = vector.broadcast %39 : vector<8x1xf32> to vector<8x384xf32>
    %41 = arith.addf %37, %40 : vector<8x384xf32>
    %42 = arith.addf %8, %32 : vector<8x384xf32>
    %43 = arith.truncf %41 : vector<8x384xf32> to vector<8x384xbf16>
    %44 = vector.extract_strided_slice %43 {offsets = [0, 0], sizes = [8, 4], strides = [1, 1]} : vector<8x384xbf16> to vector<8x4xbf16>
    %45 = vector.extract_strided_slice %43 {offsets = [0, 0], sizes = [8, 380], strides = [1, 1]} : vector<8x384xbf16> to vector<8x380xbf16>
    %46 = tpu.concatenate %44, %45 in 1 : vector<8x4xbf16>, vector<8x380xbf16> -> vector<8x384xbf16>
    %47 = vector.extract_strided_slice %43 {offsets = [0, 0], sizes = [8, 2], strides = [1, 1]} : vector<8x384xbf16> to vector<8x2xbf16>
    %48 = vector.extract_strided_slice %43 {offsets = [0, 0], sizes = [8, 382], strides = [1, 1]} : vector<8x384xbf16> to vector<8x382xbf16>
    %49 = tpu.concatenate %47, %48 in 1 : vector<8x2xbf16>, vector<8x382xbf16> -> vector<8x384xbf16>
    %50 = tpu.concatenate %46, %49, %43, %7 in 0 : vector<8x384xbf16>, vector<8x384xbf16>, vector<8x384xbf16>, vector<2x384xbf16> -> vector<26x384xbf16>
    %c1 = arith.constant 1 : index
    %c0_23 = arith.constant 0 : index
    %c0_24 = arith.constant 0 : index
    %51 = vector.load %arg4[%c1, %c0_23, %c0_24] : memref<2x16x26xbf16, #tpu.memory_space<vmem>>, vector<1x16x26xbf16>
    %52 = vector.shape_cast %51 : vector<1x16x26xbf16> to vector<16x26xbf16>
    %cst_25 = arith.constant dense<0.000000e+00> : vector<16x384xf32>
    %53 = tpu.matmul %52, %50, %cst_25 {dimension_numbers = #tpu.dot_dimension_numbers<[1], [0], [0], [1], [0, 0, 1, 1], [], []>} : vector<16x26xbf16>, vector<26x384xbf16>, vector<16x384xf32> -> vector<16x384xf32>
    %c1_26 = arith.constant 1 : index
    %c0_27 = arith.constant 0 : index
    %c0_28 = arith.constant 0 : index
    %54 = vector.load %arg5[%c1_26, %c0_27, %c0_28] : memref<2x16x1xf32, #tpu.memory_space<vmem>>, vector<1x16x1xf32>
    %55 = vector.shape_cast %54 : vector<1x16x1xf32> to vector<16x1xf32>
    %56 = vector.broadcast %55 : vector<16x1xf32> to vector<16x384xf32>
    %57 = arith.addf %53, %56 : vector<16x384xf32>
    %58 = vector.extract_strided_slice %57 {offsets = [0, 0], sizes = [8, 384], strides = [1, 1]} : vector<16x384xf32> to vector<8x384xf32>
    %59 = math.tanh %58 : vector<8x384xf32>
    %60 = vector.extract_strided_slice %57 {offsets = [8, 0], sizes = [8, 384], strides = [1, 1]} : vector<16x384xf32> to vector<8x384xf32>
    %61 = arith.negf %60 : vector<8x384xf32>
    %62 = math.exp %61 : vector<8x384xf32>
    %cst_29 = arith.constant 1.000000e+00 : f32
    %63 = vector.broadcast %cst_29 : f32 to vector<8x384xf32>
    %64 = arith.addf %63, %62 : vector<8x384xf32>
    %65 = arith.divf %63, %64 : vector<8x384xf32>
    %66 = arith.mulf %59, %65 : vector<8x384xf32>
    %c1_30 = arith.constant 1 : index
    %c0_31 = arith.constant 0 : index
    %c0_32 = arith.constant 0 : index
    %67 = vector.load %arg6[%c1_30, %c0_31, %c0_32] : memref<2x8x8xbf16, #tpu.memory_space<vmem>>, vector<1x8x8xbf16>
    %68 = vector.shape_cast %67 : vector<1x8x8xbf16> to vector<8x8xbf16>
    %69 = arith.truncf %66 : vector<8x384xf32> to vector<8x384xbf16>
    %cst_33 = arith.constant dense<0.000000e+00> : vector<8x384xf32>
    %70 = tpu.matmul %68, %69, %cst_33 {dimension_numbers = #tpu.dot_dimension_numbers<[1], [0], [0], [1], [0, 0, 1, 1], [], []>} : vector<8x8xbf16>, vector<8x384xbf16>, vector<8x384xf32> -> vector<8x384xf32>
    %71 = arith.addf %41, %70 : vector<8x384xf32>
    %c1_34 = arith.constant 1 : index
    %c0_35 = arith.constant 0 : index
    %c0_36 = arith.constant 0 : index
    %72 = vector.load %arg7[%c1_34, %c0_35, %c0_36] : memref<2x8x1xf32, #tpu.memory_space<vmem>>, vector<1x8x1xf32>
    %73 = vector.shape_cast %72 : vector<1x8x1xf32> to vector<8x1xf32>
    %74 = vector.broadcast %73 : vector<8x1xf32> to vector<8x384xf32>
    %75 = arith.addf %71, %74 : vector<8x384xf32>
    %76 = arith.addf %42, %66 : vector<8x384xf32>
    %c0_37 = arith.constant 0 : index
    %c0_38 = arith.constant 0 : index
    %c0_39 = arith.constant 0 : index
    %77 = vector.load %arg10[%c0_37, %c0_38, %c0_39] : memref<1x8x384xf32, #tpu.memory_space<vmem>>, vector<1x8x384xf32>
    %78 = vector.shape_cast %77 : vector<1x8x384xf32> to vector<8x384xf32>
    %79 = vector.shape_cast %75 : vector<8x384xf32> to vector<1x8x384xf32>
    tpu.vector_store %arg10[%c0_37, %c0_38, %c0_39], %79 {strides = array<i32>} : memref<1x8x384xf32, #tpu.memory_space<vmem>>, vector<1x8x384xf32>,
    %c0_40 = arith.constant 0 : index
    %c0_41 = arith.constant 0 : index
    %80 = vector.load %arg8[%c0_40, %c0_41] : memref<8x8xbf16, #tpu.memory_space<vmem>>, vector<8x8xbf16>
    %81 = arith.truncf %76 : vector<8x384xf32> to vector<8x384xbf16>
    %cst_42 = arith.constant dense<0.000000e+00> : vector<8x384xf32>
    %82 = tpu.matmul %80, %81, %cst_42 {dimension_numbers = #tpu.dot_dimension_numbers<[1], [0], [0], [1], [0, 0, 1, 1], [], []>} : vector<8x8xbf16>, vector<8x384xbf16>, vector<8x384xf32> -> vector<8x384xf32>
    %c0_43 = arith.constant 0 : index
    %c0_44 = arith.constant 0 : index
    %83 = vector.load %arg9[%c0_43, %c0_44] : memref<8x1xf32, #tpu.memory_space<vmem>>, vector<8x1xf32>
    %84 = vector.broadcast %83 : vector<8x1xf32> to vector<8x384xf32>
    %85 = arith.addf %82, %84 : vector<8x384xf32>
    %c0_45 = arith.constant 0 : index
    %c0_46 = arith.constant 0 : index
    %c0_47 = arith.constant 0 : index
    %86 = vector.load %arg11[%c0_45, %c0_46, %c0_47] : memref<1x8x384xf32, #tpu.memory_space<vmem>>, vector<1x8x384xf32>
    %87 = vector.shape_cast %86 : vector<1x8x384xf32> to vector<8x384xf32>
    %88 = vector.shape_cast %85 : vector<8x384xf32> to vector<1x8x384xf32>
    tpu.vector_store %arg11[%c0_45, %c0_46, %c0_47], %88 {strides = array<i32>} : memref<1x8x384xf32, #tpu.memory_space<vmem>>, vector<1x8x384xf32>,
    return
  }
  func.func @transform_0(%arg0: i32) -> (i32, i32, i32) {
    %c0_i32 = arith.constant 0 : i32
    %c0_i32_0 = arith.constant 0 : i32
    %c0_i32_1 = arith.constant 0 : i32
    return %arg0, %c0_i32, %c0_i32_0 : i32, i32, i32
  }
  func.func @transform_1(%arg0: i32) -> (i32, i32, i32) {
    %c0_i32 = arith.constant 0 : i32
    %c0_i32_0 = arith.constant 0 : i32
    %c0_i32_1 = arith.constant 0 : i32
    return %arg0, %c0_i32, %c0_i32_0 : i32, i32, i32
  }
  func.func @transform_2(%arg0: i32) -> (i32, i32) {
    %c0_i32 = arith.constant 0 : i32
    %c0_i32_0 = arith.constant 0 : i32
    %c0_i32_1 = arith.constant 0 : i32
    return %c0_i32, %c0_i32_0 : i32, i32
  }
  func.func @transform_3(%arg0: i32) -> (i32, i32, i32) {
    %c0_i32 = arith.constant 0 : i32
    %c0_i32_0 = arith.constant 0 : i32
    %c0_i32_1 = arith.constant 0 : i32
    %c0_i32_2 = arith.constant 0 : i32
    return %c0_i32, %c0_i32_0, %c0_i32_1 : i32, i32, i32
  }
  func.func @transform_4(%arg0: i32) -> (i32, i32, i32) {
    %c0_i32 = arith.constant 0 : i32
    %c0_i32_0 = arith.constant 0 : i32
    %c0_i32_1 = arith.constant 0 : i32
    %c0_i32_2 = arith.constant 0 : i32
    return %c0_i32, %c0_i32_0, %c0_i32_1 : i32, i32, i32
  }
  func.func @transform_5(%arg0: i32) -> (i32, i32, i32) {
    %c0_i32 = arith.constant 0 : i32
    %c0_i32_0 = arith.constant 0 : i32
    %c0_i32_1 = arith.constant 0 : i32
    %c0_i32_2 = arith.constant 0 : i32
    return %c0_i32, %c0_i32_0, %c0_i32_1 : i32, i32, i32
  }
  func.func @transform_6(%arg0: i32) -> (i32, i32, i32) {
    %c0_i32 = arith.constant 0 : i32
    %c0_i32_0 = arith.constant 0 : i32
    %c0_i32_1 = arith.constant 0 : i32
    %c0_i32_2 = arith.constant 0 : i32
    return %c0_i32, %c0_i32_0, %c0_i32_1 : i32, i32, i32
  }
  func.func @transform_7(%arg0: i32) -> (i32, i32) {
    %c0_i32 = arith.constant 0 : i32
    %c0_i32_0 = arith.constant 0 : i32
    %c0_i32_1 = arith.constant 0 : i32
    return %c0_i32, %c0_i32_0 : i32, i32
  }
  func.func @transform_8(%arg0: i32) -> (i32, i32) {
    %c0_i32 = arith.constant 0 : i32
    %c0_i32_0 = arith.constant 0 : i32
    %c0_i32_1 = arith.constant 0 : i32
    return %c0_i32, %c0_i32_0 : i32, i32
  }
  func.func @transform_9(%arg0: i32) -> (i32, i32, i32) {
    %c0_i32 = arith.constant 0 : i32
    %c0_i32_0 = arith.constant 0 : i32
    %c0_i32_1 = arith.constant 0 : i32
    return %arg0, %c0_i32, %c0_i32_0 : i32, i32, i32
  }
  func.func @transform_10(%arg0: i32) -> (i32, i32, i32) {
    %c0_i32 = arith.constant 0 : i32
    %c0_i32_0 = arith.constant 0 : i32
    %c0_i32_1 = arith.constant 0 : i32
    return %arg0, %c0_i32, %c0_i32_0 : i32, i32, i32
  }
}

</mosaic_0001>

<llo_original>
// kernel: tpu_custom_call.1
$region0: #{tpu_custom_call.1}
  #allocation0 [shape = 'u32[]', space=smem, size = 0x4, offset = 0x4, fixed_abs, tag = 'smem constant byte address 0x4 - core index']
  #allocation1 [shape = 'u32[144,128]{1,0:T(1,128)}', space=vmem, size = 0x12000, scoped, tag = 'internal scratch']
  %s0 = inlined_call_operand.vmem [shape: f32[2,2,384], index: 0, kind: input, shape index: {}]
  %s1 = inlined_call_operand.vmem [shape: f32[2,2,384], index: 1, kind: input, shape index: {}]
  %s2 = inlined_call_operand.vmem [shape: bf16[8,2], index: 2, kind: input, shape index: {}]
  %s3 = inlined_call_operand.vmem [shape: bf16[2,16,26], index: 3, kind: input, shape index: {}]
  %s4 = inlined_call_operand.vmem [shape: f32[2,16,1], index: 4, kind: input, shape index: {}]
  %s5 = inlined_call_operand.vmem [shape: bf16[2,8,8], index: 5, kind: input, shape index: {}]
  %s6 = inlined_call_operand.vmem [shape: f32[2,8,1], index: 6, kind: input, shape index: {}]
  %s7 = inlined_call_operand.vmem [shape: bf16[8,8], index: 7, kind: input, shape index: {}]
  %s8 = inlined_call_operand.vmem [shape: f32[8,1], index: 8, kind: input, shape index: {}]
  %s9 = inlined_call_operand.hbm [shape: f32[2,8,384], index: 9, kind: output, shape index: {0}]
  %s10 = inlined_call_operand.hbm [shape: f32[2,8,384], index: 10, kind: output, shape index: {1}]
  %11 = xla_tuple %s9, %s10
  %s12 = sld [smem:[#allocation0]]
  $region77: #{tpu_custom_call.1} parent=0
    _
  %s14 = ssub.s32 1, %s12
  %s15 = scalar_select 0, %s14, %s12
  $region1: #{tpu_custom_call.1} parent=0
    #allocation2 [shape = 'u8[24576]{0}', space=vmem, size = 0x6000, scoped, tag = 'output window, operand 0']
    #allocation3 [shape = 's32[2]{0}', space=sflag, size = 0x8, scoped, tag = 'scoped memory for tpu_custom_call.1']
    #allocation4 [shape = 'u8[24576]{0}', space=vmem, size = 0x6000, scoped, tag = 'output window, operand 1']
    #allocation5 [shape = 's32[2]{0}', space=sflag, size = 0x8, scoped, tag = 'scoped memory for tpu_custom_call.1']
    %16 = vsyncpa [#allocation3], 0
    %s17 = scalar_lea.sflag [#allocation3], 1
    %18 = vsyncpa %s17, 0
    %19 = vsyncpa [#allocation5], 0
    %s20 = scalar_lea.sflag [#allocation5], 1
    %21 = vsyncpa %s20, 0
    loop: start=0, step=1, limit=4
    $region2: #{tpu_custom_call.1} parent=1 // loop_pre_header
      _
    $region3: #{tpu_custom_call.1} parent=1 // loop_header
      %s23 = sphi 0, %s27
      %p24 = scmp.ge.s32.totalorder %s23, 4
      %s33 = sphi 0, %s35
      %s36 = sphi 0, %s33
      %s37 = sphi 0, %s36
      %s53 = sphi 0, %s37
      %s59 = sphi 0, %s61
      %s62 = sphi 0, %s59
      %s63 = sphi 0, %s62
      %s79 = sphi 0, %s63
      %s83 = sphi 0, %s83
      %s85 = sphi 0, %s83
      %s86 = sphi 0, %s85
      %s100 = sphi 0, %s86
      %s104 = sphi 0, %s104
      %s106 = sphi 0, %s104
      %s107 = sphi 0, %s106
      %s121 = sphi 0, %s107
      %s125 = sphi 0, %s125
      %s127 = sphi 0, %s125
      %s128 = sphi 0, %s127
      %s142 = sphi 0, %s128
      %s146 = sphi 0, %s146
      %s148 = sphi 0, %s146
      %s149 = sphi 0, %s148
      %s163 = sphi 0, %s149
      %s167 = sphi 0, %s167
      %s169 = sphi 0, %s167
      %s170 = sphi 0, %s169
      %s184 = sphi 0, %s170
      %s188 = sphi 0, %s188
      %s190 = sphi 0, %s188
      %s191 = sphi 0, %s190
      %s205 = sphi 0, %s191
      %s209 = sphi 0, %s209
      %s211 = sphi 0, %s209
      %s212 = sphi 0, %s211
      %s226 = sphi 0, %s212
      %s232 = sphi 0, %s234
      %s235 = sphi 0, %s232
      %s236 = sphi 0, %s235
      %s252 = sphi 0, %s236
      %s258 = sphi 0, %s260
      %s261 = sphi 0, %s258
      %s262 = sphi 0, %s261
      %s278 = sphi 0, %s262
    $region4: #{tpu_custom_call.1} parent=1 // loop_header_branch
      %26 = sbr.rel (%p24) target = $region8
    $region5: #{tpu_custom_call.1} parent=1 // loop_body
      %s28 = ssub.s32 %s23, 1
      %s29 = ssub.s32 %s23, 2
      %s30 = sadd.s32 %s23, 1
      %s31 = ssub.s32 %s23, %s30
      %p32 = scmp.eq.s32.totalorder %s31, 0
      %s34 = sadd.s32 %s33, 1
      %s35 = scalar_select %p32, %s33, %s34
      %p38 = pneg %p32
      %p39 = scmp.eq.s32.totalorder %s23, 1
      %p40 = por %p38, %p39
      %p41 = scmp.ne.s32.totalorder %s33, %s36
      %p42 = scmp.eq.s32.totalorder %s23, 0
      %p43 = por %p41, %p42
      %p44 = scmp.ne.s32.totalorder %s33, %s36
      %p45 = scmp.eq.s32.totalorder %s28, 1
      %p46 = por %p44, %p45
      %p47 = scmp.ne.s32.totalorder %s36, %s37
      %p48 = scmp.eq.s32.totalorder %s28, 0
      %p49 = por %p47, %p48
      %p50 = scmp.ne.s32.totalorder %s36, %s37
      %p51 = scmp.eq.s32.totalorder %s29, 1
      %p52 = por %p50, %p51
      %p54 = scmp.ne.s32.totalorder %s37, %s53
      %p55 = scmp.eq.s32.totalorder %s29, 0
      %p56 = por %p54, %p55
      %s57 = ssub.s32 %s23, %s30
      %p58 = scmp.eq.s32.totalorder %s57, 0
      %s60 = sadd.s32 %s59, 1
      %s61 = scalar_select %p58, %s59, %s60
      %p64 = pneg %p58
      %p65 = scmp.eq.s32.totalorder %s23, 1
      %p66 = por %p64, %p65
      %p67 = scmp.ne.s32.totalorder %s59, %s62
      %p68 = scmp.eq.s32.totalorder %s23, 0
      %p69 = por %p67, %p68
      %p70 = scmp.ne.s32.totalorder %s59, %s62
      %p71 = scmp.eq.s32.totalorder %s28, 1
      %p72 = por %p70, %p71
      %p73 = scmp.ne.s32.totalorder %s62, %s63
      %p74 = scmp.eq.s32.totalorder %s28, 0
      %p75 = por %p73, %p74
      %p76 = scmp.ne.s32.totalorder %s62, %s63
      %p77 = scmp.eq.s32.totalorder %s29, 1
      %p78 = por %p76, %p77
      %p80 = scmp.ne.s32.totalorder %s63, %s79
      %p81 = scmp.eq.s32.totalorder %s29, 0
      %p82 = por %p80, %p81
      %s84 = sadd.s32 %s83, 1
      %p87 = scmp.eq.s32.totalorder %s23, 1
      %p88 = scmp.ne.s32.totalorder %s83, %s85
      %p89 = scmp.eq.s32.totalorder %s23, 0
      %p90 = por %p88, %p89
      %p91 = scmp.ne.s32.totalorder %s83, %s85
      %p92 = scmp.eq.s32.totalorder %s28, 1
      %p93 = por %p91, %p92
      %p94 = scmp.ne.s32.totalorder %s85, %s86
      %p95 = scmp.eq.s32.totalorder %s28, 0
      %p96 = por %p94, %p95
      %p97 = scmp.ne.s32.totalorder %s85, %s86
      %p98 = scmp.eq.s32.totalorder %s29, 1
      %p99 = por %p97, %p98
      %p101 = scmp.ne.s32.totalorder %s86, %s100
      %p102 = scmp.eq.s32.totalorder %s29, 0
      %p103 = por %p101, %p102
      %s105 = sadd.s32 %s104, 1
      %p108 = scmp.eq.s32.totalorder %s23, 1
      %p109 = scmp.ne.s32.totalorder %s104, %s106
      %p110 = scmp.eq.s32.totalorder %s23, 0
      %p111 = por %p109, %p110
      %p112 = scmp.ne.s32.totalorder %s104, %s106
      %p113 = scmp.eq.s32.totalorder %s28, 1
      %p114 = por %p112, %p113
      %p115 = scmp.ne.s32.totalorder %s106, %s107
      %p116 = scmp.eq.s32.totalorder %s28, 0
      %p117 = por %p115, %p116
      %p118 = scmp.ne.s32.totalorder %s106, %s107
      %p119 = scmp.eq.s32.totalorder %s29, 1
      %p120 = por %p118, %p119
      %p122 = scmp.ne.s32.totalorder %s107, %s121
      %p123 = scmp.eq.s32.totalorder %s29, 0
      %p124 = por %p122, %p123
      %s126 = sadd.s32 %s125, 1
      %p129 = scmp.eq.s32.totalorder %s23, 1
      %p130 = scmp.ne.s32.totalorder %s125, %s127
      %p131 = scmp.eq.s32.totalorder %s23, 0
      %p132 = por %p130, %p131
      %p133 = scmp.ne.s32.totalorder %s125, %s127
      %p134 = scmp.eq.s32.totalorder %s28, 1
      %p135 = por %p133, %p134
      %p136 = scmp.ne.s32.totalorder %s127, %s128
      %p137 = scmp.eq.s32.totalorder %s28, 0
      %p138 = por %p136, %p137
      %p139 = scmp.ne.s32.totalorder %s127, %s128
      %p140 = scmp.eq.s32.totalorder %s29, 1
      %p141 = por %p139, %p140
      %p143 = scmp.ne.s32.totalorder %s128, %s142
      %p144 = scmp.eq.s32.totalorder %s29, 0
      %p145 = por %p143, %p144
      %s147 = sadd.s32 %s146, 1
      %p150 = scmp.eq.s32.totalorder %s23, 1
      %p151 = scmp.ne.s32.totalorder %s146, %s148
      %p152 = scmp.eq.s32.totalorder %s23, 0
      %p153 = por %p151, %p152
      %p154 = scmp.ne.s32.totalorder %s146, %s148
      %p155 = scmp.eq.s32.totalorder %s28, 1
      %p156 = por %p154, %p155
      %p157 = scmp.ne.s32.totalorder %s148, %s149
      %p158 = scmp.eq.s32.totalorder %s28, 0
      %p159 = por %p157, %p158
      %p160 = scmp.ne.s32.totalorder %s148, %s149
      %p161 = scmp.eq.s32.totalorder %s29, 1
      %p162 = por %p160, %p161
      %p164 = scmp.ne.s32.totalorder %s149, %s163
      %p165 = scmp.eq.s32.totalorder %s29, 0
      %p166 = por %p164, %p165
      %s168 = sadd.s32 %s167, 1
      %p171 = scmp.eq.s32.totalorder %s23, 1
      %p172 = scmp.ne.s32.totalorder %s167, %s169
      %p173 = scmp.eq.s32.totalorder %s23, 0
      %p174 = por %p172, %p173
      %p175 = scmp.ne.s32.totalorder %s167, %s169
      %p176 = scmp.eq.s32.totalorder %s28, 1
      %p177 = por %p175, %p176
      %p178 = scmp.ne.s32.totalorder %s169, %s170
      %p179 = scmp.eq.s32.totalorder %s28, 0
      %p180 = por %p178, %p179
      %p181 = scmp.ne.s32.totalorder %s169, %s170
      %p182 = scmp.eq.s32.totalorder %s29, 1
      %p183 = por %p181, %p182
      %p185 = scmp.ne.s32.totalorder %s170, %s184
      %p186 = scmp.eq.s32.totalorder %s29, 0
      %p187 = por %p185, %p186
      %s189 = sadd.s32 %s188, 1
      %p192 = scmp.eq.s32.totalorder %s23, 1
      %p193 = scmp.ne.s32.totalorder %s188, %s190
      %p194 = scmp.eq.s32.totalorder %s23, 0
      %p195 = por %p193, %p194
      %p196 = scmp.ne.s32.totalorder %s188, %s190
      %p197 = scmp.eq.s32.totalorder %s28, 1
      %p198 = por %p196, %p197
      %p199 = scmp.ne.s32.totalorder %s190, %s191
      %p200 = scmp.eq.s32.totalorder %s28, 0
      %p201 = por %p199, %p200
      %p202 = scmp.ne.s32.totalorder %s190, %s191
      %p203 = scmp.eq.s32.totalorder %s29, 1
      %p204 = por %p202, %p203
      %p206 = scmp.ne.s32.totalorder %s191, %s205
      %p207 = scmp.eq.s32.totalorder %s29, 0
      %p208 = por %p206, %p207
      %s210 = sadd.s32 %s209, 1
      %p213 = scmp.eq.s32.totalorder %s23, 1
      %p214 = scmp.ne.s32.totalorder %s209, %s211
      %p215 = scmp.eq.s32.totalorder %s23, 0
      %p216 = por %p214, %p215
      %p217 = scmp.ne.s32.totalorder %s209, %s211
      %p218 = scmp.eq.s32.totalorder %s28, 1
      %p219 = por %p217, %p218
      %p220 = scmp.ne.s32.totalorder %s211, %s212
      %p221 = scmp.eq.s32.totalorder %s28, 0
      %p222 = por %p220, %p221
      %p223 = scmp.ne.s32.totalorder %s211, %s212
      %p224 = scmp.eq.s32.totalorder %s29, 1
      %p225 = por %p223, %p224
      %p227 = scmp.ne.s32.totalorder %s212, %s226
      %p228 = scmp.eq.s32.totalorder %s29, 0
      %p229 = por %p227, %p228
      %s230 = ssub.s32 %s23, %s30
      %p231 = scmp.eq.s32.totalorder %s230, 0
      %s233 = sadd.s32 %s232, 1
      %s234 = scalar_select %p231, %s232, %s233
      %p237 = pneg %p231
      %p238 = scmp.eq.s32.totalorder %s23, 1
      %p239 = por %p237, %p238
      %p240 = scmp.ne.s32.totalorder %s232, %s235
      %p241 = scmp.eq.s32.totalorder %s23, 0
      %p242 = por %p240, %p241
      %p243 = scmp.ne.s32.totalorder %s232, %s235
      %p244 = scmp.eq.s32.totalorder %s28, 1
      %p245 = por %p243, %p244
      %p246 = scmp.ne.s32.totalorder %s235, %s236
      %p247 = scmp.eq.s32.totalorder %s28, 0
      %p248 = por %p246, %p247
      %p249 = scmp.ne.s32.totalorder %s235, %s236
      %p250 = scmp.eq.s32.totalorder %s29, 1
      %p251 = por %p249, %p250
      %p253 = scmp.ne.s32.totalorder %s236, %s252
      %p254 = scmp.eq.s32.totalorder %s29, 0
      %p255 = por %p253, %p254
      %s256 = ssub.s32 %s23, %s30
      %p257 = scmp.eq.s32.totalorder %s256, 0
      %s259 = sadd.s32 %s258, 1
      %s260 = scalar_select %p257, %s258, %s259
      %p263 = pneg %p257
      %p264 = scmp.eq.s32.totalorder %s23, 1
      %p265 = por %p263, %p264
      %p266 = scmp.ne.s32.totalorder %s258, %s261
      %p267 = scmp.eq.s32.totalorder %s23, 0
      %p268 = por %p266, %p267
      %p269 = scmp.ne.s32.totalorder %s258, %s261
      %p270 = scmp.eq.s32.totalorder %s28, 1
      %p271 = por %p269, %p270
      %p272 = scmp.ne.s32.totalorder %s261, %s262
      %p273 = scmp.eq.s32.totalorder %s28, 0
      %p274 = por %p272, %p273
      %p275 = scmp.ne.s32.totalorder %s261, %s262
      %p276 = scmp.eq.s32.totalorder %s29, 1
      %p277 = por %p275, %p276
      %p279 = scmp.ne.s32.totalorder %s262, %s278
      %p280 = scmp.eq.s32.totalorder %s29, 0
      %p281 = por %p279, %p280
      %p282 = scmp.le.s32.totalorder 1, %s23
      %p283 = scmp.lt.s32.totalorder %s23, 3
      %p284 = pnand %p282, %p283
      %p285 = pneg %p284
      // Predicated region
      $region9: #{tpu_custom_call.1} parent=5 // pred_check
        _
      $region10: #{tpu_custom_call.1} parent=5 // pred_check_branch
        %287 = sbr.rel (%p284) target = $region12
      $region11: #{tpu_custom_call.1} parent=5 // pred_region
        %s288 = ssub.s32 %s23, 1
        // Predicated region
        $region13: #{tpu_custom_call.1} parent=11 // pred_check
          %p289 = pneg %p96
        $region14: #{tpu_custom_call.1} parent=11 // pred_check_branch
          %291 = sbr.rel (%p289) target = $region16
        $region15: #{tpu_custom_call.1} parent=11 // pred_region
          _
        $region16: #{tpu_custom_call.1} parent=11 // pred_fallthru
          _
        // Predicated region
        $region17: #{tpu_custom_call.1} parent=11 // pred_check
          %p292 = pneg %p117
        $region18: #{tpu_custom_call.1} parent=11 // pred_check_branch
          %294 = sbr.rel (%p292) target = $region20
        $region19: #{tpu_custom_call.1} parent=11 // pred_region
          _
        $region20: #{tpu_custom_call.1} parent=11 // pred_fallthru
          _
        // Predicated region
        $region21: #{tpu_custom_call.1} parent=11 // pred_check
          %p295 = pneg %p138
        $region22: #{tpu_custom_call.1} parent=11 // pred_check_branch
          %297 = sbr.rel (%p295) target = $region24
        $region23: #{tpu_custom_call.1} parent=11 // pred_region
          _
        $region24: #{tpu_custom_call.1} parent=11 // pred_fallthru
          _
        // Predicated region
        $region25: #{tpu_custom_call.1} parent=11 // pred_check
          %p298 = pneg %p159
        $region26: #{tpu_custom_call.1} parent=11 // pred_check_branch
          %300 = sbr.rel (%p298) target = $region28
        $region27: #{tpu_custom_call.1} parent=11 // pred_region
          _
        $region28: #{tpu_custom_call.1} parent=11 // pred_fallthru
          _
        // Predicated region
        $region29: #{tpu_custom_call.1} parent=11 // pred_check
          %p301 = pneg %p180
        $region30: #{tpu_custom_call.1} parent=11 // pred_check_branch
          %303 = sbr.rel (%p301) target = $region32
        $region31: #{tpu_custom_call.1} parent=11 // pred_region
          _
        $region32: #{tpu_custom_call.1} parent=11 // pred_fallthru
          _
        // Predicated region
        $region33: #{tpu_custom_call.1} parent=11 // pred_check
          %p304 = pneg %p201
        $region34: #{tpu_custom_call.1} parent=11 // pred_check_branch
          %306 = sbr.rel (%p304) target = $region36
        $region35: #{tpu_custom_call.1} parent=11 // pred_region
          _
        $region36: #{tpu_custom_call.1} parent=11 // pred_fallthru
          _
        // Predicated region
        $region37: #{tpu_custom_call.1} parent=11 // pred_check
          %p307 = pneg %p222
        $region38: #{tpu_custom_call.1} parent=11 // pred_check_branch
          %309 = sbr.rel (%p307) target = $region40
        $region39: #{tpu_custom_call.1} parent=11 // pred_region
          _
        $region40: #{tpu_custom_call.1} parent=11 // pred_fallthru
          _
      $region12: #{tpu_custom_call.1} parent=5 // pred_fallthru
        _
      %p310 = scmp.lt.s32.totalorder %s23, 2
      // Predicated region
      $region41: #{tpu_custom_call.1} parent=5 // pred_check
        %p311 = pneg %p310
      $region42: #{tpu_custom_call.1} parent=5 // pred_check_branch
        %313 = sbr.rel (%p311) target = $region44
      $region43: #{tpu_custom_call.1} parent=5 // pred_region
        // Predicated region
        $region45: #{tpu_custom_call.1} parent=43 // pred_check
          %p314 = pneg %p43
        $region46: #{tpu_custom_call.1} parent=43 // pred_check_branch
          %316 = sbr.rel (%p314) target = $region48
        $region47: #{tpu_custom_call.1} parent=43 // pred_region
          %p317 = scmp.lt.s32.totalorder %s23, 1
          %s318 = scalar_select %p317, %s23, 1
          %s319 = smul.addr %s318, 3
          %s320 = smul.addr %s319, 2
          %s321 = scalar_lea.vmem %s0, %s320
        $region48: #{tpu_custom_call.1} parent=43 // pred_fallthru
          _
        // Predicated region
        $region49: #{tpu_custom_call.1} parent=43 // pred_check
          %p322 = pneg %p69
        $region50: #{tpu_custom_call.1} parent=43 // pred_check_branch
          %324 = sbr.rel (%p322) target = $region52
        $region51: #{tpu_custom_call.1} parent=43 // pred_region
          %p325 = scmp.lt.s32.totalorder %s23, 1
          %s326 = scalar_select %p325, %s23, 1
          %s327 = smul.addr %s326, 3
          %s328 = smul.addr %s327, 2
          %s329 = scalar_lea.vmem %s1, %s328
        $region52: #{tpu_custom_call.1} parent=43 // pred_fallthru
          _
      $region44: #{tpu_custom_call.1} parent=5 // pred_fallthru
        _
      %p330 = scmp.le.s32.totalorder 1, %s23
      %p331 = scmp.lt.s32.totalorder %s23, 3
      %p332 = pnand %p330, %p331
      %p333 = pneg %p332
      // Predicated region
      $region53: #{tpu_custom_call.1} parent=5 // pred_check
        _
      $region54: #{tpu_custom_call.1} parent=5 // pred_check_branch
        %335 = sbr.rel (%p332) target = $region56
      $region55: #{tpu_custom_call.1} parent=5 // pred_region
        %s336 = ssub.s32 %s23, 1
        %p337 = scmp.lt.s32.totalorder %s28, 1
        %s338 = scalar_select %p337, %s28, 1
        %s339 = smul.addr %s338, 3
        %s340 = smul.addr %s339, 2
        %s341 = scalar_lea.vmem %s0, %s340
        %p342 = pneg %p49
        %p343 = pneg %p46
        %p344 = scmp.lt.s32.totalorder %s28, 1
        %s345 = scalar_select %p344, %s28, 1
        %s346 = smul.addr %s345, 3
        %s347 = smul.addr %s346, 2
        %s348 = scalar_lea.vmem %s1, %s347
        %p349 = pneg %p75
        %p350 = pneg %p72
        %p351 = pneg %p96
        %p352 = pneg %p93
        %p353 = pneg %p117
        %p354 = pneg %p114
        %p355 = pneg %p138
        %p356 = pneg %p135
        %p357 = pneg %p159
        %p358 = pneg %p156
        %p359 = pneg %p180
        %p360 = pneg %p177
        %p361 = pneg %p201
        %p362 = pneg %p198
        %p363 = pneg %p222
        %p364 = pneg %p219
        %p365 = pneg %p248
        %p366 = pneg %p245
        %s367 = sand.u32 %s235, 1
        %s368 = scalar_lea.sflag [#allocation3], %s367
        %s369 = sand.u32 %s235, 1
        %s370 = smul.addr %s369, 24
        %s371 = scalar_lea.vmem [#allocation2], %s370
        %p372 = pneg %p274
        %p373 = pneg %p271
        %s374 = sand.u32 %s261, 1
        %s375 = scalar_lea.sflag [#allocation5], %s374
        %s376 = sand.u32 %s261, 1
        %s377 = smul.addr %s376, 24
        %s378 = scalar_lea.vmem [#allocation4], %s377
        %p379 = scmp.lt.s32.totalorder %s28, 1
        %s380 = scalar_select %p379, %s28, 1
        %s381 = smul.addr %s380, 3
        %s382 = smul.addr %s381, 2
        %s383 = scalar_lea.vmem %s0, %s382
        %p384 = scmp.lt.s32.totalorder %s28, 1
        %s385 = scalar_select %p384, %s28, 1
        %s386 = smul.addr %s385, 3
        %s387 = smul.addr %s386, 2
        %s388 = scalar_lea.vmem %s1, %s387
        %v390 = vld [vmem:[%s2] sm:$0xf]
        %v391 = vld [vmem:[%s383] sm:$0x3f]
        %v393 = vcombine.high %v391, %v391
        %v395 = vunpack.c.l.s4 1983009808
        %v396 = vunpack.c.0.s8 %v395
        %v397 = vlaneseq
        %v398 = vshrl.u32 %v397, 7
        %v399 = vsub.s32 %v396, %v398
        %v400 = vrot.slane %v391, %v399
        %v402 = vunpack.c.l.s4 1983009808
        %v403 = vunpack.c.0.s8 %v402
        %v404 = vlaneseq
        %v405 = vshrl.u32 %v404, 7
        %v406 = vsub.s32 %v403, %v405
        %v407 = vrot.slane %v393, %v406
        %v408 = vcombine.high %v400, %v400
        %v412 = vpack.c.bf16 %v400, %v400
        %v413 = vpack.c.bf16 %v408, %v408
        %v414 = vpack.c.bf16 %v407, %v407
        %vm415 = vcmask 15360
        %v417 = vsel %vm415, %v390, 0
        %vm419 = vcmask 1040384
        %v421 = vsel %vm419, %v412, 0
        %v424 = vsel %vm419, %v413, 0
        %v427 = vsel %vm419, %v414, 0
        %429 = vmatprep.subr.bf16.mxu0 %v424
        %430 = vmatpush1.bf16.msra.mxu0 %v421
        %431 = vmatprep.subr.bf16.mxu0 0
        %432 = vmatpush1.bf16.msra.mxu0 0
        %433 = vmatprep.subr.bf16.mxu0 0
        %434 = vmatpush1.bf16.msra.mxu0 0
        %435 = vmatprep.subr.bf16.mxu0 0
        %436 = vmatpush1.bf16.msra.mxu0 0
        %437 = vmatprep.subr.bf16.mxu0 0
        %438 = vmatpush1.bf16.msra.mxu0 0
        %439 = vmatprep.subr.bf16.mxu0 0
        %440 = vmatpush1.bf16.msra.mxu0 0
        %441 = vmatprep.subr.bf16.mxu0 0
        %442 = vmatpush1.bf16.msra.mxu0 0
        %443 = vmatprep.subr.bf16.mxu0 0
        %444 = vmatpush1.bf16.msra.mxu0 0
        %445 = vmatprep.subr.bf16.mxu0 0
        %446 = vmatpush1.bf16.msra.mxu0 0
        %447 = vmatprep.subr.bf16.mxu0 0
        %448 = vmatpush1.bf16.msra.mxu0 0
        %449 = vmatprep.subr.bf16.mxu0 0
        %450 = vmatpush1.bf16.msra.mxu0 0
        %451 = vmatprep.subr.bf16.mxu0 0
        %452 = vmatpush1.bf16.msra.mxu0 0
        %453 = vmatprep.subr.bf16.mxu0 0
        %454 = vmatpush1.bf16.msra.mxu0 0
        %455 = vmatprep.subr.bf16.mxu0 0
        %456 = vmatpush1.bf16.msra.mxu0 0
        %457 = vmatprep.subr.bf16.mxu0 0
        %458 = vmatpush1.bf16.msra.mxu0 0
        %459 = vmatprep.subr.bf16.mxu0 0
        %460 = vmatpush1.bf16.msra.mxu0 0
        %461 = vmatprep.mubr.bf16.mxu0 0
        %462 = vmatmul.mubr.bf16.gmra.mrb[0].mxu0 %v417
        %v463 = vpop.f32.mrb[0].mxu0
        %v464 = vadd.f32 0.0, %v463
        %v465 = vpop.f32.mrb[0].mxu0
        %v466 = vadd.f32 0.0, %v465
        %v467 = vpop.f32.mrb[0].mxu0
        %v468 = vpop.f32.mrb[0].mxu0
        %469 = vdwg.mxu0
        %470 = vmatprep.subr.bf16.mxu0 0
        %471 = vmatpush1.bf16.msra.mxu0 %v427
        %472 = vmatprep.subr.bf16.mxu0 0
        %473 = vmatpush1.bf16.msra.mxu0 0
        %474 = vmatprep.subr.bf16.mxu0 0
        %475 = vmatpush1.bf16.msra.mxu0 0
        %476 = vmatprep.subr.bf16.mxu0 0
        %477 = vmatpush1.bf16.msra.mxu0 0
        %478 = vmatprep.subr.bf16.mxu0 0
        %479 = vmatpush1.bf16.msra.mxu0 0
        %480 = vmatprep.subr.bf16.mxu0 0
        %481 = vmatpush1.bf16.msra.mxu0 0
        %482 = vmatprep.subr.bf16.mxu0 0
        %483 = vmatpush1.bf16.msra.mxu0 0
        %484 = vmatprep.subr.bf16.mxu0 0
        %485 = vmatpush1.bf16.msra.mxu0 0
        %486 = vmatprep.subr.bf16.mxu0 0
        %487 = vmatpush1.bf16.msra.mxu0 0
        %488 = vmatprep.subr.bf16.mxu0 0
        %489 = vmatpush1.bf16.msra.mxu0 0
        %490 = vmatprep.subr.bf16.mxu0 0
        %491 = vmatpush1.bf16.msra.mxu0 0
        %492 = vmatprep.subr.bf16.mxu0 0
        %493 = vmatpush1.bf16.msra.mxu0 0
        %494 = vmatprep.subr.bf16.mxu0 0
        %495 = vmatpush1.bf16.msra.mxu0 0
        %496 = vmatprep.subr.bf16.mxu0 0
        %497 = vmatpush1.bf16.msra.mxu0 0
        %498 = vmatprep.subr.bf16.mxu0 0
        %499 = vmatpush1.bf16.msra.mxu0 0
        %500 = vmatprep.subr.bf16.mxu0 0
        %501 = vmatpush1.bf16.msra.mxu0 0
        %502 = vmatprep.mubr.bf16.mxu0 0
        %503 = vmatmul.mubr.bf16.gmra.mrb[0].mxu0 %v417
        %v504 = vpop.f32.mrb[0].mxu0
        %v505 = vadd.f32 0.0, %v504
        %v506 = vpop.f32.mrb[0].mxu0
        %v507 = vpop.f32.mrb[0].mxu0
        %v508 = vpop.f32.mrb[0].mxu0
        %509 = vdwg.mxu0
        %v510 = vld [vmem:[%s388] sm:$0x3f]
        %v512 = vcombine.high %v510, %v510
        %v514 = vunpack.c.l.s4 1983009808
        %v515 = vunpack.c.0.s8 %v514
        %v516 = vlaneseq
        %v517 = vshrl.u32 %v516, 7
        %v518 = vsub.s32 %v515, %v517
        %v519 = vrot.slane %v510, %v518
        %v521 = vunpack.c.l.s4 1983009808
        %v522 = vunpack.c.0.s8 %v521
        %v523 = vlaneseq
        %v524 = vshrl.u32 %v523, 7
        %v525 = vsub.s32 %v522, %v524
        %v526 = vrot.slane %v512, %v525
        %v527 = vcombine.high %v519, %v519
        %v531 = vpack.c.bf16 %v519, %v519
        %v532 = vpack.c.bf16 %v527, %v527
        %v533 = vpack.c.bf16 %v526, %v526
        %v534 = vpack.c.bf16 %v464, %v464
        %v535 = vpack.c.bf16 %v466, %v466
        %v536 = vpack.c.bf16 %v505, %v505
        %540 = vrot.lane.b32.xlu0 %v534, 2
        %v541 = vpop.permute.xlu0 %540
        %542 = vrot.lane.b32.xlu0 %v535, 2
        %v543 = vpop.permute.xlu0 %542
        %544 = vrot.lane.b32.xlu0 %v536, 2
        %v545 = vpop.permute.xlu0 %544
        %vm546 = vcmask 15360
        %v547 = vsel %vm546, %v541, %v543
        %v548 = vsel %vm546, %v543, %v545
        %v551 = vsel %vm415, %v534, %v541
        %552 = vrot.lane.b32.xlu0 %v534, 1
        %v553 = vpop.permute.xlu0 %552
        %554 = vrot.lane.b32.xlu0 %v535, 1
        %v555 = vpop.permute.xlu0 %554
        %556 = vrot.lane.b32.xlu0 %v536, 1
        %v557 = vpop.permute.xlu0 %556
        %vm558 = vcmask 7168
        %v559 = vsel %vm558, %v553, %v555
        %v560 = vsel %vm558, %v555, %v557
        %vm561 = vcmask 7168
        %v563 = vsel %vm561, %v534, %v553
        %v565 = vrot.slane %v563, 4
        %v566 = vrot.slane %v559, 4
        %v567 = vrot.slane %v560, 4
        %v571 = vrot.slane %v531, 4
        %v572 = vrot.slane %v532, 4
        %v573 = vrot.slane %v533, 4
        %vm574 = vcmask 1043456
        %v576 = vsel %vm574, %v551, %v565
        %v580 = vsel %vm574, %v547, %v566
        %v584 = vsel %vm574, %v548, %v567
        %v587 = vsel %vm574, %v534, %v571
        %v590 = vsel %vm574, %v535, %v572
        %v593 = vsel %vm574, %v536, %v573
        %v594 = vld [vmem:[%s3] sm:$0xf]
        %v595 = vld [vmem:[%s3 + $0x4] sm:$0xf]
        %v596 = vld [vmem:[%s4] sm:$0xff]
        %v597 = vld [vmem:[%s4 + $0x8] sm:$0xff]
        %599 = vset.pattern.permute.xlu0 0
        %600 = vperm.xlu0 %599, %v596
        %v601 = vpop.permute.xlu0 %600
        %604 = vset.pattern.permute.xlu0 0
        %605 = vperm.xlu0 %604, %v597
        %v606 = vpop.permute.xlu0 %605
        %v610 = vunpack.c.l.b16 %v594
        %v611 = vunpack.c.l.b16 %v595
        %v612 = vpack.c.b16 %v611, %v610
        %vm613 = vcmask 211968
        %v615 = vsel %vm613, %v612, 0
        %vm617 = vcmask 1044480
        %v618 = vsel %vm617, %v587, 0
        %v620 = vsel %vm617, %v590, 0
        %v622 = vsel %vm617, %v593, 0
        %624 = vmatprep.subr.bf16.mxu0 %v580
        %625 = vmatpush1.bf16.msra.mxu0 %v576
        %626 = vmatprep.subr.bf16.mxu0 %v620
        %627 = vmatpush1.bf16.msra.mxu0 %v618
        %628 = vmatprep.subr.bf16.mxu0 0
        %629 = vmatpush1.bf16.msra.mxu0 0
        %630 = vmatprep.subr.bf16.mxu0 0
        %631 = vmatpush1.bf16.msra.mxu0 0
        %632 = vmatprep.subr.bf16.mxu0 0
        %633 = vmatpush1.bf16.msra.mxu0 0
        %634 = vmatprep.subr.bf16.mxu0 0
        %635 = vmatpush1.bf16.msra.mxu0 0
        %636 = vmatprep.subr.bf16.mxu0 0
        %637 = vmatpush1.bf16.msra.mxu0 0
        %638 = vmatprep.subr.bf16.mxu0 0
        %639 = vmatpush1.bf16.msra.mxu0 0
        %640 = vmatprep.subr.bf16.mxu0 0
        %641 = vmatpush1.bf16.msra.mxu0 0
        %642 = vmatprep.subr.bf16.mxu0 0
        %643 = vmatpush1.bf16.msra.mxu0 0
        %644 = vmatprep.subr.bf16.mxu0 0
        %645 = vmatpush1.bf16.msra.mxu0 0
        %646 = vmatprep.subr.bf16.mxu0 0
        %647 = vmatpush1.bf16.msra.mxu0 0
        %648 = vmatprep.subr.bf16.mxu0 0
        %649 = vmatpush1.bf16.msra.mxu0 0
        %650 = vmatprep.subr.bf16.mxu0 0
        %651 = vmatpush1.bf16.msra.mxu0 0
        %652 = vmatprep.subr.bf16.mxu0 0
        %653 = vmatpush1.bf16.msra.mxu0 0
        %654 = vmatprep.subr.bf16.mxu0 0
        %655 = vmatpush1.bf16.msra.mxu0 0
        %656 = vmatprep.mubr.bf16.mxu0 0
        %657 = vmatmul.mubr.bf16.gmra.mrb[0].mxu0 %v615
        %v658 = vpop.f32.mrb[0].mxu0
        %v659 = vadd.f32 %v601, %v658
        %v660 = vpop.f32.mrb[0].mxu0
        %v661 = vadd.f32 %v601, %v660
        %v662 = vpop.f32.mrb[0].mxu0
        %v663 = vadd.f32 %v606, %v662
        %v664 = vpop.f32.mrb[0].mxu0
        %v665 = vadd.f32 %v606, %v664
        %666 = vdwg.mxu0
        %667 = vmatprep.subr.bf16.mxu0 0
        %668 = vmatpush1.bf16.msra.mxu0 %v584
        %669 = vmatprep.subr.bf16.mxu0 0
        %670 = vmatpush1.bf16.msra.mxu0 %v622
        %671 = vmatprep.subr.bf16.mxu0 0
        %672 = vmatpush1.bf16.msra.mxu0 0
        %673 = vmatprep.subr.bf16.mxu0 0
        %674 = vmatpush1.bf16.msra.mxu0 0
        %675 = vmatprep.subr.bf16.mxu0 0
        %676 = vmatpush1.bf16.msra.mxu0 0
        %677 = vmatprep.subr.bf16.mxu0 0
        %678 = vmatpush1.bf16.msra.mxu0 0
        %679 = vmatprep.subr.bf16.mxu0 0
        %680 = vmatpush1.bf16.msra.mxu0 0
        %681 = vmatprep.subr.bf16.mxu0 0
        %682 = vmatpush1.bf16.msra.mxu0 0
        %683 = vmatprep.subr.bf16.mxu0 0
        %684 = vmatpush1.bf16.msra.mxu0 0
        %685 = vmatprep.subr.bf16.mxu0 0
        %686 = vmatpush1.bf16.msra.mxu0 0
        %687 = vmatprep.subr.bf16.mxu0 0
        %688 = vmatpush1.bf16.msra.mxu0 0
        %689 = vmatprep.subr.bf16.mxu0 0
        %690 = vmatpush1.bf16.msra.mxu0 0
        %691 = vmatprep.subr.bf16.mxu0 0
        %692 = vmatpush1.bf16.msra.mxu0 0
        %693 = vmatprep.subr.bf16.mxu0 0
        %694 = vmatpush1.bf16.msra.mxu0 0
        %695 = vmatprep.subr.bf16.mxu0 0
        %696 = vmatpush1.bf16.msra.mxu0 0
        %697 = vmatprep.subr.bf16.mxu0 0
        %698 = vmatpush1.bf16.msra.mxu0 0
        %699 = vmatprep.mubr.bf16.mxu0 0
        %700 = vmatmul.mubr.bf16.gmra.mrb[0].mxu0 %v615
        %v701 = vpop.f32.mrb[0].mxu0
        %v702 = vadd.f32 %v601, %v701
        %v703 = vpop.f32.mrb[0].mxu0
        %v704 = vpop.f32.mrb[0].mxu0
        %v705 = vadd.f32 %v606, %v704
        %v706 = vpop.f32.mrb[0].mxu0
        %707 = vdwg.mxu0
        %v708 = vtanh.pop %v659
        %v709 = vtanh.pop %v661
        %v710 = vtanh.pop %v702
        %v711 = vxor.u32 %v663, 2147483648
        %v712 = vxor.u32 %v665, 2147483648
        %v713 = vxor.u32 %v705, 2147483648
        %v714 = vmul.f32 %v711, 1.442695
        %v715 = vpow.pop %v714
        %v716 = vmul.f32 %v712, 1.442695
        %v717 = vpow.pop %v716
        %v718 = vmul.f32 %v713, 1.442695
        %v719 = vpow.pop %v718
        %v720 = vadd.f32 %v715, 1.0
        %v721 = vadd.f32 %v717, 1.0
        %v722 = vadd.f32 %v719, 1.0
        %v723 = vrcp.pop %v720
        %v724 = vmul.f32 1.0, %v723
        %v725 = vrcp.pop %v721
        %v726 = vmul.f32 1.0, %v725
        %v727 = vrcp.pop %v722
        %v728 = vmul.f32 1.0, %v727
        %v729 = vmul.f32 %v708, %v724
        %v730 = vmul.f32 %v709, %v726
        %v731 = vmul.f32 %v710, %v728
        %v732 = vld [vmem:[%s5] sm:$0xf]
        %v733 = vpack.c.bf16 %v729, %v729
        %v734 = vpack.c.bf16 %v730, %v730
        %v735 = vpack.c.bf16 %v731, %v731
        %vm736 = vcmask 64512
        %v738 = vsel %vm736, %v732, 0
        %v741 = vsel %vm574, %v733, 0
        %v744 = vsel %vm574, %v734, 0
        %v747 = vsel %vm574, %v735, 0
        %749 = vmatprep.subr.bf16.mxu0 %v744
        %750 = vmatpush1.bf16.msra.mxu0 %v741
        %751 = vmatprep.subr.bf16.mxu0 0
        %752 = vmatpush1.bf16.msra.mxu0 0
        %753 = vmatprep.subr.bf16.mxu0 0
        %754 = vmatpush1.bf16.msra.mxu0 0
        %755 = vmatprep.subr.bf16.mxu0 0
        %756 = vmatpush1.bf16.msra.mxu0 0
        %757 = vmatprep.subr.bf16.mxu0 0
        %758 = vmatpush1.bf16.msra.mxu0 0
        %759 = vmatprep.subr.bf16.mxu0 0
        %760 = vmatpush1.bf16.msra.mxu0 0
        %761 = vmatprep.subr.bf16.mxu0 0
        %762 = vmatpush1.bf16.msra.mxu0 0
        %763 = vmatprep.subr.bf16.mxu0 0
        %764 = vmatpush1.bf16.msra.mxu0 0
        %765 = vmatprep.subr.bf16.mxu0 0
        %766 = vmatpush1.bf16.msra.mxu0 0
        %767 = vmatprep.subr.bf16.mxu0 0
        %768 = vmatpush1.bf16.msra.mxu0 0
        %769 = vmatprep.subr.bf16.mxu0 0
        %770 = vmatpush1.bf16.msra.mxu0 0
        %771 = vmatprep.subr.bf16.mxu0 0
        %772 = vmatpush1.bf16.msra.mxu0 0
        %773 = vmatprep.subr.bf16.mxu0 0
        %774 = vmatpush1.bf16.msra.mxu0 0
        %775 = vmatprep.subr.bf16.mxu0 0
        %776 = vmatpush1.bf16.msra.mxu0 0
        %777 = vmatprep.subr.bf16.mxu0 0
        %778 = vmatpush1.bf16.msra.mxu0 0
        %779 = vmatprep.subr.bf16.mxu0 0
        %780 = vmatpush1.bf16.msra.mxu0 0
        %781 = vmatprep.mubr.bf16.mxu0 0
        %782 = vmatmul.mubr.bf16.gmra.mrb[0].mxu0 %v738
        %v783 = vpop.f32.mrb[0].mxu0
        %v784 = vadd.f32 0.0, %v783
        %v785 = vpop.f32.mrb[0].mxu0
        %v786 = vadd.f32 0.0, %v785
        %v787 = vpop.f32.mrb[0].mxu0
        %v788 = vpop.f32.mrb[0].mxu0
        %789 = vdwg.mxu0
        %790 = vmatprep.subr.bf16.mxu0 0
        %791 = vmatpush1.bf16.msra.mxu0 %v747
        %792 = vmatprep.subr.bf16.mxu0 0
        %793 = vmatpush1.bf16.msra.mxu0 0
        %794 = vmatprep.subr.bf16.mxu0 0
        %795 = vmatpush1.bf16.msra.mxu0 0
        %796 = vmatprep.subr.bf16.mxu0 0
        %797 = vmatpush1.bf16.msra.mxu0 0
        %798 = vmatprep.subr.bf16.mxu0 0
        %799 = vmatpush1.bf16.msra.mxu0 0
        %800 = vmatprep.subr.bf16.mxu0 0
        %801 = vmatpush1.bf16.msra.mxu0 0
        %802 = vmatprep.subr.bf16.mxu0 0
        %803 = vmatpush1.bf16.msra.mxu0 0
        %804 = vmatprep.subr.bf16.mxu0 0
        %805 = vmatpush1.bf16.msra.mxu0 0
        %806 = vmatprep.subr.bf16.mxu0 0
        %807 = vmatpush1.bf16.msra.mxu0 0
        %808 = vmatprep.subr.bf16.mxu0 0
        %809 = vmatpush1.bf16.msra.mxu0 0
        %810 = vmatprep.subr.bf16.mxu0 0
        %811 = vmatpush1.bf16.msra.mxu0 0
        %812 = vmatprep.subr.bf16.mxu0 0
        %813 = vmatpush1.bf16.msra.mxu0 0
        %814 = vmatprep.subr.bf16.mxu0 0
        %815 = vmatpush1.bf16.msra.mxu0 0
        %816 = vmatprep.subr.bf16.mxu0 0
        %817 = vmatpush1.bf16.msra.mxu0 0
        %818 = vmatprep.subr.bf16.mxu0 0
        %819 = vmatpush1.bf16.msra.mxu0 0
        %820 = vmatprep.subr.bf16.mxu0 0
        %821 = vmatpush1.bf16.msra.mxu0 0
        %822 = vmatprep.mubr.bf16.mxu0 0
        %823 = vmatmul.mubr.bf16.gmra.mrb[0].mxu0 %v738
        %v824 = vpop.f32.mrb[0].mxu0
        %v825 = vadd.f32 0.0, %v824
        %v826 = vpop.f32.mrb[0].mxu0
        %v827 = vpop.f32.mrb[0].mxu0
        %v828 = vpop.f32.mrb[0].mxu0
        %829 = vdwg.mxu0
        %v830 = vadd.f32 %v464, %v784
        %v831 = vadd.f32 %v466, %v786
        %v832 = vadd.f32 %v505, %v825
        %v833 = vld [vmem:[%s6] sm:$0xff]
        %835 = vset.pattern.permute.xlu0 0
        %836 = vperm.xlu0 %835, %v833
        %v837 = vpop.permute.xlu0 %836
        %v839 = vadd.f32 %v830, %v837
        %v840 = vadd.f32 %v831, %v837
        %v841 = vadd.f32 %v832, %v837
        %v842 = vadd.f32 %v729, 0.0
        %v843 = vadd.f32 %v730, 0.0
        %v844 = vadd.f32 %v731, 0.0
        %v845 = vpack.c.bf16 %v839, %v839
        %v846 = vpack.c.bf16 %v840, %v840
        %v847 = vpack.c.bf16 %v841, %v841
        %851 = vrot.lane.b32.xlu0 %v845, 4
        %v852 = vpop.permute.xlu0 %851
        %853 = vrot.lane.b32.xlu0 %v846, 4
        %v854 = vpop.permute.xlu0 %853
        %855 = vrot.lane.b32.xlu0 %v847, 4
        %v856 = vpop.permute.xlu0 %855
        %vm857 = vcmask 31744
        %v858 = vsel %vm857, %v852, %v854
        %v859 = vsel %vm857, %v854, %v856
        %vm860 = vcmask 31744
        %v863 = vsel %vm860, %v845, %v852
        %864 = vrot.lane.b32.xlu0 %v845, 2
        %v865 = vpop.permute.xlu0 %864
        %866 = vrot.lane.b32.xlu0 %v846, 2
        %v867 = vpop.permute.xlu0 %866
        %868 = vrot.lane.b32.xlu0 %v847, 2
        %v869 = vpop.permute.xlu0 %868
        %v870 = vsel %vm546, %v865, %v867
        %v871 = vsel %vm546, %v867, %v869
        %v873 = vsel %vm415, %v845, %v865
        %v875 = vrot.slane %v873, 4
        %v876 = vrot.slane %v870, 4
        %v877 = vrot.slane %v871, 4
        %v879 = vsel %vm574, %v863, %v875
        %v883 = vsel %vm574, %v858, %v876
        %v887 = vsel %vm574, %v859, %v877
        %v889 = vsel %vm574, %v845, %v571
        %v891 = vsel %vm574, %v846, %v572
        %v893 = vsel %vm574, %v847, %v573
        %s894 = scalar_lea.vmem %s3, 8
        %v895 = vld [vmem:[%s894] sm:$0xf]
        %v896 = vld [vmem:[%s894 + $0x4] sm:$0xf]
        %s897 = scalar_lea.vmem %s4, 16
        %v898 = vld [vmem:[%s897] sm:$0xff]
        %v899 = vld [vmem:[%s897 + $0x8] sm:$0xff]
        %901 = vset.pattern.permute.xlu0 0
        %902 = vperm.xlu0 %901, %v898
        %v903 = vpop.permute.xlu0 %902
        %906 = vset.pattern.permute.xlu0 0
        %907 = vperm.xlu0 %906, %v899
        %v908 = vpop.permute.xlu0 %907
        %v912 = vunpack.c.l.b16 %v895
        %v913 = vunpack.c.l.b16 %v896
        %v914 = vpack.c.b16 %v913, %v912
        %v916 = vsel %vm613, %v914, 0
        %v918 = vsel %vm617, %v889, 0
        %v920 = vsel %vm617, %v891, 0
        %v922 = vsel %vm617, %v893, 0
        %924 = vmatprep.subr.bf16.mxu0 %v883
        %925 = vmatpush1.bf16.msra.mxu0 %v879
        %926 = vmatprep.subr.bf16.mxu0 %v920
        %927 = vmatpush1.bf16.msra.mxu0 %v918
        %928 = vmatprep.subr.bf16.mxu0 0
        %929 = vmatpush1.bf16.msra.mxu0 0
        %930 = vmatprep.subr.bf16.mxu0 0
        %931 = vmatpush1.bf16.msra.mxu0 0
        %932 = vmatprep.subr.bf16.mxu0 0
        %933 = vmatpush1.bf16.msra.mxu0 0
        %934 = vmatprep.subr.bf16.mxu0 0
        %935 = vmatpush1.bf16.msra.mxu0 0
        %936 = vmatprep.subr.bf16.mxu0 0
        %937 = vmatpush1.bf16.msra.mxu0 0
        %938 = vmatprep.subr.bf16.mxu0 0
        %939 = vmatpush1.bf16.msra.mxu0 0
        %940 = vmatprep.subr.bf16.mxu0 0
        %941 = vmatpush1.bf16.msra.mxu0 0
        %942 = vmatprep.subr.bf16.mxu0 0
        %943 = vmatpush1.bf16.msra.mxu0 0
        %944 = vmatprep.subr.bf16.mxu0 0
        %945 = vmatpush1.bf16.msra.mxu0 0
        %946 = vmatprep.subr.bf16.mxu0 0
        %947 = vmatpush1.bf16.msra.mxu0 0
        %948 = vmatprep.subr.bf16.mxu0 0
        %949 = vmatpush1.bf16.msra.mxu0 0
        %950 = vmatprep.subr.bf16.mxu0 0
        %951 = vmatpush1.bf16.msra.mxu0 0
        %952 = vmatprep.subr.bf16.mxu0 0
        %953 = vmatpush1.bf16.msra.mxu0 0
        %954 = vmatprep.subr.bf16.mxu0 0
        %955 = vmatpush1.bf16.msra.mxu0 0
        %956 = vmatprep.mubr.bf16.mxu0 0
        %957 = vmatmul.mubr.bf16.gmra.mrb[0].mxu0 %v916
        %v958 = vpop.f32.mrb[0].mxu0
        %v959 = vadd.f32 %v903, %v958
        %v960 = vpop.f32.mrb[0].mxu0
        %v961 = vadd.f32 %v903, %v960
        %v962 = vpop.f32.mrb[0].mxu0
        %v963 = vadd.f32 %v908, %v962
        %v964 = vpop.f32.mrb[0].mxu0
        %v965 = vadd.f32 %v908, %v964
        %966 = vdwg.mxu0
        %967 = vmatprep.subr.bf16.mxu0 0
        %968 = vmatpush1.bf16.msra.mxu0 %v887
        %969 = vmatprep.subr.bf16.mxu0 0
        %970 = vmatpush1.bf16.msra.mxu0 %v922
        %971 = vmatprep.subr.bf16.mxu0 0
        %972 = vmatpush1.bf16.msra.mxu0 0
        %973 = vmatprep.subr.bf16.mxu0 0
        %974 = vmatpush1.bf16.msra.mxu0 0
        %975 = vmatprep.subr.bf16.mxu0 0
        %976 = vmatpush1.bf16.msra.mxu0 0
        %977 = vmatprep.subr.bf16.mxu0 0
        %978 = vmatpush1.bf16.msra.mxu0 0
        %979 = vmatprep.subr.bf16.mxu0 0
        %980 = vmatpush1.bf16.msra.mxu0 0
        %981 = vmatprep.subr.bf16.mxu0 0
        %982 = vmatpush1.bf16.msra.mxu0 0
        %983 = vmatprep.subr.bf16.mxu0 0
        %984 = vmatpush1.bf16.msra.mxu0 0
        %985 = vmatprep.subr.bf16.mxu0 0
        %986 = vmatpush1.bf16.msra.mxu0 0
        %987 = vmatprep.subr.bf16.mxu0 0
        %988 = vmatpush1.bf16.msra.mxu0 0
        %989 = vmatprep.subr.bf16.mxu0 0
        %990 = vmatpush1.bf16.msra.mxu0 0
        %991 = vmatprep.subr.bf16.mxu0 0
        %992 = vmatpush1.bf16.msra.mxu0 0
        %993 = vmatprep.subr.bf16.mxu0 0
        %994 = vmatpush1.bf16.msra.mxu0 0
        %995 = vmatprep.subr.bf16.mxu0 0
        %996 = vmatpush1.bf16.msra.mxu0 0
        %997 = vmatprep.subr.bf16.mxu0 0
        %998 = vmatpush1.bf16.msra.mxu0 0
        %999 = vmatprep.mubr.bf16.mxu0 0
        %1000 = vmatmul.mubr.bf16.gmra.mrb[0].mxu0 %v916
        %v1001 = vpop.f32.mrb[0].mxu0
        %v1002 = vadd.f32 %v903, %v1001
        %v1003 = vpop.f32.mrb[0].mxu0
        %v1004 = vpop.f32.mrb[0].mxu0
        %v1005 = vadd.f32 %v908, %v1004
        %v1006 = vpop.f32.mrb[0].mxu0
        %1007 = vdwg.mxu0
        %v1008 = vtanh.pop %v959
        %v1009 = vtanh.pop %v961
        %v1010 = vtanh.pop %v1002
        %v1011 = vxor.u32 %v963, 2147483648
        %v1012 = vxor.u32 %v965, 2147483648
        %v1013 = vxor.u32 %v1005, 2147483648
        %v1014 = vmul.f32 %v1011, 1.442695
        %v1015 = vpow.pop %v1014
        %v1016 = vmul.f32 %v1012, 1.442695
        %v1017 = vpow.pop %v1016
        %v1018 = vmul.f32 %v1013, 1.442695
        %v1019 = vpow.pop %v1018
        %v1020 = vadd.f32 %v1015, 1.0
        %v1021 = vadd.f32 %v1017, 1.0
        %v1022 = vadd.f32 %v1019, 1.0
        %v1023 = vrcp.pop %v1020
        %v1024 = vmul.f32 1.0, %v1023
        %v1025 = vrcp.pop %v1021
        %v1026 = vmul.f32 1.0, %v1025
        %v1027 = vrcp.pop %v1022
        %v1028 = vmul.f32 1.0, %v1027
        %v1029 = vmul.f32 %v1008, %v1024
        %v1030 = vmul.f32 %v1009, %v1026
        %v1031 = vmul.f32 %v1010, %v1028
        %s1032 = scalar_lea.vmem %s5, 4
        %v1033 = vld [vmem:[%s1032] sm:$0xf]
        %v1034 = vpack.c.bf16 %v1029, %v1029
        %v1035 = vpack.c.bf16 %v1030, %v1030
        %v1036 = vpack.c.bf16 %v1031, %v1031
        %v1038 = vsel %vm736, %v1033, 0
        %v1041 = vsel %vm574, %v1034, 0
        %v1044 = vsel %vm574, %v1035, 0
        %v1047 = vsel %vm574, %v1036, 0
        %1049 = vmatprep.subr.bf16.mxu0 %v1044
        %1050 = vmatpush1.bf16.msra.mxu0 %v1041
        %1051 = vmatprep.subr.bf16.mxu0 0
        %1052 = vmatpush1.bf16.msra.mxu0 0
        %1053 = vmatprep.subr.bf16.mxu0 0
        %1054 = vmatpush1.bf16.msra.mxu0 0
        %1055 = vmatprep.subr.bf16.mxu0 0
        %1056 = vmatpush1.bf16.msra.mxu0 0
        %1057 = vmatprep.subr.bf16.mxu0 0
        %1058 = vmatpush1.bf16.msra.mxu0 0
        %1059 = vmatprep.subr.bf16.mxu0 0
        %1060 = vmatpush1.bf16.msra.mxu0 0
        %1061 = vmatprep.subr.bf16.mxu0 0
        %1062 = vmatpush1.bf16.msra.mxu0 0
        %1063 = vmatprep.subr.bf16.mxu0 0
        %1064 = vmatpush1.bf16.msra.mxu0 0
        %1065 = vmatprep.subr.bf16.mxu0 0
        %1066 = vmatpush1.bf16.msra.mxu0 0
        %1067 = vmatprep.subr.bf16.mxu0 0
        %1068 = vmatpush1.bf16.msra.mxu0 0
        %1069 = vmatprep.subr.bf16.mxu0 0
        %1070 = vmatpush1.bf16.msra.mxu0 0
        %1071 = vmatprep.subr.bf16.mxu0 0
        %1072 = vmatpush1.bf16.msra.mxu0 0
        %1073 = vmatprep.subr.bf16.mxu0 0
        %1074 = vmatpush1.bf16.msra.mxu0 0
        %1075 = vmatprep.subr.bf16.mxu0 0
        %1076 = vmatpush1.bf16.msra.mxu0 0
        %1077 = vmatprep.subr.bf16.mxu0 0
        %1078 = vmatpush1.bf16.msra.mxu0 0
        %1079 = vmatprep.subr.bf16.mxu0 0
        %1080 = vmatpush1.bf16.msra.mxu0 0
        %1081 = vmatprep.mubr.bf16.mxu0 0
        %1082 = vmatmul.mubr.bf16.gmra.mrb[0].mxu0 %v1038
        %v1083 = vpop.f32.mrb[0].mxu0
        %v1084 = vadd.f32 0.0, %v1083
        %v1085 = vpop.f32.mrb[0].mxu0
        %v1086 = vadd.f32 0.0, %v1085
        %v1087 = vpop.f32.mrb[0].mxu0
        %v1088 = vpop.f32.mrb[0].mxu0
        %1089 = vdwg.mxu0
        %1090 = vmatprep.subr.bf16.mxu0 0
        %1091 = vmatpush1.bf16.msra.mxu0 %v1047
        %1092 = vmatprep.subr.bf16.mxu0 0
        %1093 = vmatpush1.bf16.msra.mxu0 0
        %1094 = vmatprep.subr.bf16.mxu0 0
        %1095 = vmatpush1.bf16.msra.mxu0 0
        %1096 = vmatprep.subr.bf16.mxu0 0
        %1097 = vmatpush1.bf16.msra.mxu0 0
        %1098 = vmatprep.subr.bf16.mxu0 0
        %1099 = vmatpush1.bf16.msra.mxu0 0
        %1100 = vmatprep.subr.bf16.mxu0 0
        %1101 = vmatpush1.bf16.msra.mxu0 0
        %1102 = vmatprep.subr.bf16.mxu0 0
        %1103 = vmatpush1.bf16.msra.mxu0 0
        %1104 = vmatprep.subr.bf16.mxu0 0
        %1105 = vmatpush1.bf16.msra.mxu0 0
        %1106 = vmatprep.subr.bf16.mxu0 0
        %1107 = vmatpush1.bf16.msra.mxu0 0
        %1108 = vmatprep.subr.bf16.mxu0 0
        %1109 = vmatpush1.bf16.msra.mxu0 0
        %1110 = vmatprep.subr.bf16.mxu0 0
        %1111 = vmatpush1.bf16.msra.mxu0 0
        %1112 = vmatprep.subr.bf16.mxu0 0
        %1113 = vmatpush1.bf16.msra.mxu0 0
        %1114 = vmatprep.subr.bf16.mxu0 0
        %1115 = vmatpush1.bf16.msra.mxu0 0
        %1116 = vmatprep.subr.bf16.mxu0 0
        %1117 = vmatpush1.bf16.msra.mxu0 0
        %1118 = vmatprep.subr.bf16.mxu0 0
        %1119 = vmatpush1.bf16.msra.mxu0 0
        %1120 = vmatprep.subr.bf16.mxu0 0
        %1121 = vmatpush1.bf16.msra.mxu0 0
        %1122 = vmatprep.mubr.bf16.mxu0 0
        %1123 = vmatmul.mubr.bf16.gmra.mrb[0].mxu0 %v1038
        %v1124 = vpop.f32.mrb[0].mxu0
        %v1125 = vadd.f32 0.0, %v1124
        %v1126 = vpop.f32.mrb[0].mxu0
        %v1127 = vpop.f32.mrb[0].mxu0
        %v1128 = vpop.f32.mrb[0].mxu0
        %1129 = vdwg.mxu0
        %v1130 = vadd.f32 %v839, %v1084
        %v1131 = vadd.f32 %v840, %v1086
        %v1132 = vadd.f32 %v841, %v1125
        %s1133 = scalar_lea.vmem %s6, 8
        %v1134 = vld [vmem:[%s1133] sm:$0xff]
        %1136 = vset.pattern.permute.xlu0 0
        %1137 = vperm.xlu0 %1136, %v1134
        %v1138 = vpop.permute.xlu0 %1137
        %v1140 = vadd.f32 %v1130, %v1138
        %v1141 = vadd.f32 %v1131, %v1138
        %v1142 = vadd.f32 %v1132, %v1138
        %v1143 = vadd.f32 %v842, %v1029
        %v1144 = vadd.f32 %v843, %v1030
        %v1145 = vadd.f32 %v844, %v1031
        %1146 = vst [vmem:[%s371] sm:$0xff] %v1140
        %1147 = vst [vmem:[%s371 + $0x8] sm:$0xff] %v1141
        %1148 = vst [vmem:[%s371 + $0x10] sm:$0xff] %v1142
        %v1149 = vld [vmem:[%s7] sm:$0xf]
        %v1150 = vpack.c.bf16 %v1143, %v1143
        %v1151 = vpack.c.bf16 %v1144, %v1144
        %v1152 = vpack.c.bf16 %v1145, %v1145
        %v1153 = vld [vmem:[%s8] sm:$0xff]
        %1155 = vset.pattern.permute.xlu0 0
        %1156 = vperm.xlu0 %1155, %v1153
        %v1157 = vpop.permute.xlu0 %1156
        %v1160 = vsel %vm736, %v1149, 0
        %v1163 = vsel %vm574, %v1150, 0
        %v1166 = vsel %vm574, %v1151, 0
        %v1169 = vsel %vm574, %v1152, 0
        %1171 = vmatprep.subr.bf16.mxu0 %v1166
        %1172 = vmatpush1.bf16.msra.mxu0 %v1163
        %1173 = vmatprep.subr.bf16.mxu0 0
        %1174 = vmatpush1.bf16.msra.mxu0 0
        %1175 = vmatprep.subr.bf16.mxu0 0
        %1176 = vmatpush1.bf16.msra.mxu0 0
        %1177 = vmatprep.subr.bf16.mxu0 0
        %1178 = vmatpush1.bf16.msra.mxu0 0
        %1179 = vmatprep.subr.bf16.mxu0 0
        %1180 = vmatpush1.bf16.msra.mxu0 0
        %1181 = vmatprep.subr.bf16.mxu0 0
        %1182 = vmatpush1.bf16.msra.mxu0 0
        %1183 = vmatprep.subr.bf16.mxu0 0
        %1184 = vmatpush1.bf16.msra.mxu0 0
        %1185 = vmatprep.subr.bf16.mxu0 0
        %1186 = vmatpush1.bf16.msra.mxu0 0
        %1187 = vmatprep.subr.bf16.mxu0 0
        %1188 = vmatpush1.bf16.msra.mxu0 0
        %1189 = vmatprep.subr.bf16.mxu0 0
        %1190 = vmatpush1.bf16.msra.mxu0 0
        %1191 = vmatprep.subr.bf16.mxu0 0
        %1192 = vmatpush1.bf16.msra.mxu0 0
        %1193 = vmatprep.subr.bf16.mxu0 0
        %1194 = vmatpush1.bf16.msra.mxu0 0
        %1195 = vmatprep.subr.bf16.mxu0 0
        %1196 = vmatpush1.bf16.msra.mxu0 0
        %1197 = vmatprep.subr.bf16.mxu0 0
        %1198 = vmatpush1.bf16.msra.mxu0 0
        %1199 = vmatprep.subr.bf16.mxu0 0
        %1200 = vmatpush1.bf16.msra.mxu0 0
        %1201 = vmatprep.subr.bf16.mxu0 0
        %1202 = vmatpush1.bf16.msra.mxu0 0
        %1203 = vmatprep.mubr.bf16.mxu0 0
        %1204 = vmatmul.mubr.bf16.gmra.mrb[0].mxu0 %v1160
        %v1205 = vpop.f32.mrb[0].mxu0
        %v1206 = vadd.f32 %v1157, %v1205
        %v1207 = vpop.f32.mrb[0].mxu0
        %v1208 = vadd.f32 %v1157, %v1207
        %v1209 = vpop.f32.mrb[0].mxu0
        %v1210 = vpop.f32.mrb[0].mxu0
        %1211 = vdwg.mxu0
        %1212 = vmatprep.subr.bf16.mxu0 0
        %1213 = vmatpush1.bf16.msra.mxu0 %v1169
        %1214 = vmatprep.subr.bf16.mxu0 0
        %1215 = vmatpush1.bf16.msra.mxu0 0
        %1216 = vmatprep.subr.bf16.mxu0 0
        %1217 = vmatpush1.bf16.msra.mxu0 0
        %1218 = vmatprep.subr.bf16.mxu0 0
        %1219 = vmatpush1.bf16.msra.mxu0 0
        %1220 = vmatprep.subr.bf16.mxu0 0
        %1221 = vmatpush1.bf16.msra.mxu0 0
        %1222 = vmatprep.subr.bf16.mxu0 0
        %1223 = vmatpush1.bf16.msra.mxu0 0
        %1224 = vmatprep.subr.bf16.mxu0 0
        %1225 = vmatpush1.bf16.msra.mxu0 0
        %1226 = vmatprep.subr.bf16.mxu0 0
        %1227 = vmatpush1.bf16.msra.mxu0 0
        %1228 = vmatprep.subr.bf16.mxu0 0
        %1229 = vmatpush1.bf16.msra.mxu0 0
        %1230 = vmatprep.subr.bf16.mxu0 0
        %1231 = vmatpush1.bf16.msra.mxu0 0
        %1232 = vmatprep.subr.bf16.mxu0 0
        %1233 = vmatpush1.bf16.msra.mxu0 0
        %1234 = vmatprep.subr.bf16.mxu0 0
        %1235 = vmatpush1.bf16.msra.mxu0 0
        %1236 = vmatprep.subr.bf16.mxu0 0
        %1237 = vmatpush1.bf16.msra.mxu0 0
        %1238 = vmatprep.subr.bf16.mxu0 0
        %1239 = vmatpush1.bf16.msra.mxu0 0
        %1240 = vmatprep.subr.bf16.mxu0 0
        %1241 = vmatpush1.bf16.msra.mxu0 0
        %1242 = vmatprep.subr.bf16.mxu0 0
        %1243 = vmatpush1.bf16.msra.mxu0 0
        %1244 = vmatprep.mubr.bf16.mxu0 0
        %1245 = vmatmul.mubr.bf16.gmra.mrb[0].mxu0 %v1160
        %v1246 = vpop.f32.mrb[0].mxu0
        %v1247 = vadd.f32 %v1157, %v1246
        %v1248 = vpop.f32.mrb[0].mxu0
        %v1249 = vpop.f32.mrb[0].mxu0
        %v1250 = vpop.f32.mrb[0].mxu0
        %1251 = vdwg.mxu0
        %1252 = vst [vmem:[%s378] sm:$0xff] %v1206
        %1253 = vst [vmem:[%s378 + $0x8] sm:$0xff] %v1208
        %1254 = vst [vmem:[%s378 + $0x10] sm:$0xff] %v1247
        %s1255 = sand.u32 %s235, 1
        %s1256 = scalar_lea.sflag [#allocation3], %s1255
        %s1257 = sand.u32 %s235, 1
        %s1258 = smul.addr %s1257, 24
        %s1259 = scalar_lea.vmem [#allocation2], %s1258
        %s1260 = sand.u32 %s261, 1
        %s1261 = scalar_lea.sflag [#allocation5], %s1260
        %s1262 = sand.u32 %s261, 1
        %s1263 = smul.addr %s1262, 24
        %s1264 = scalar_lea.vmem [#allocation4], %s1263
        // Predicated region
        $region57: #{tpu_custom_call.1} parent=55 // pred_check
          %p1265 = pneg %p245
        $region58: #{tpu_custom_call.1} parent=55 // pred_check_branch
          %1267 = sbr.rel (%p1265) target = $region60
        $region59: #{tpu_custom_call.1} parent=55 // pred_region
          %s1269 = ssub.s32 384, 384
          %1270 = vsyncadd %s1256, %s1269
          %s1271 = smul.addr %s28, 3
          %s1272 = smul.addr %s1271, 128
          %s1273 = scalar_lea.hbm %s9, %s1272
          %s1275 = sshll.u32 %s1259, 4
          %s1276 = int_to_ptr.vmem [resolvable:$true] %s1275
          %1278 = dma.vmem_to_hbm [thread:$0]  %s1276, 384, %s1273, %s1256
        $region60: #{tpu_custom_call.1} parent=55 // pred_fallthru
          _
        // Predicated region
        $region61: #{tpu_custom_call.1} parent=55 // pred_check
          %p1279 = pneg %p271
        $region62: #{tpu_custom_call.1} parent=55 // pred_check_branch
          %1281 = sbr.rel (%p1279) target = $region64
        $region63: #{tpu_custom_call.1} parent=55 // pred_region
          %s1283 = ssub.s32 384, 384
          %1284 = vsyncadd %s1261, %s1283
          %s1285 = smul.addr %s28, 3
          %s1286 = smul.addr %s1285, 128
          %s1287 = scalar_lea.hbm %s10, %s1286
          %s1289 = sshll.u32 %s1264, 4
          %s1290 = int_to_ptr.vmem [resolvable:$true] %s1289
          %1292 = dma.vmem_to_hbm [thread:$0]  %s1290, 384, %s1287, %s1261
        $region64: #{tpu_custom_call.1} parent=55 // pred_fallthru
          _
      $region56: #{tpu_custom_call.1} parent=5 // pred_fallthru
        _
      %p1293 = scmp.le.s32.totalorder 2, %s23
      // Predicated region
      $region65: #{tpu_custom_call.1} parent=5 // pred_check
        %p1294 = pneg %p1293
      $region66: #{tpu_custom_call.1} parent=5 // pred_check_branch
        %1296 = sbr.rel (%p1294) target = $region68
      $region67: #{tpu_custom_call.1} parent=5 // pred_region
        %s1297 = ssub.s32 %s23, 2
        // Predicated region
        $region69: #{tpu_custom_call.1} parent=67 // pred_check
          %p1298 = pneg %p251
        $region70: #{tpu_custom_call.1} parent=67 // pred_check_branch
          %1300 = sbr.rel (%p1298) target = $region72
        $region71: #{tpu_custom_call.1} parent=67 // pred_region
          %s1301 = sand.u32 %s236, 1
          %s1302 = scalar_lea.sflag [#allocation3], %s1301
          %s1303 = sand.u32 %s236, 1
          %s1304 = smul.addr %s1303, 24
          %s1305 = scalar_lea.vmem [#allocation2], %s1304
          %1306 = dma.done %s1302, 384
        $region72: #{tpu_custom_call.1} parent=67 // pred_fallthru
          _
        // Predicated region
        $region73: #{tpu_custom_call.1} parent=67 // pred_check
          %p1307 = pneg %p277
        $region74: #{tpu_custom_call.1} parent=67 // pred_check_branch
          %1309 = sbr.rel (%p1307) target = $region76
        $region75: #{tpu_custom_call.1} parent=67 // pred_region
          %s1310 = sand.u32 %s262, 1
          %s1311 = scalar_lea.sflag [#allocation5], %s1310
          %s1312 = sand.u32 %s262, 1
          %s1313 = smul.addr %s1312, 24
          %s1314 = scalar_lea.vmem [#allocation4], %s1313
          %1315 = dma.done %s1311, 384
        $region76: #{tpu_custom_call.1} parent=67 // pred_fallthru
          _
      $region68: #{tpu_custom_call.1} parent=5 // pred_fallthru
        _
    $region6: #{tpu_custom_call.1} parent=1 // loop_footer
      %s27 = sadd.s32 1, %s23
    $region7: #{tpu_custom_call.1} parent=1 // loop_footer_branch
      %22 = sbr.rel target = $region3
    $region8: #{tpu_custom_call.1} parent=1 // loop_exit
      _
    %1316 = vsyncpa [#allocation3], 1
    %s1317 = scalar_lea.sflag [#allocation3], 1
    %1318 = vsyncpa %s1317, 1
    %1319 = vsyncpa [#allocation5], 1
    %s1320 = scalar_lea.sflag [#allocation5], 1
    %1321 = vsyncpa %s1320, 1

</llo_original>
